<compile_context>
chip_gen: v6e
topology: v6e:2x2x1
jax: 0.10.0
libtpu: 0.0.40
codegen_flags: <defaults>
</compile_context>

<pallas_src>
import jax
import jax.numpy as jnp
from jax.experimental import pallas as pl
from jax.experimental.pallas import tpu as pltpu


# ----------------------------------------------------------------------------
# Kernel
# ----------------------------------------------------------------------------
def _make_lstm_predictor_kernel(num_layers: int):
    """Pallas kernel for a `num_layers`-deep LSTM + 2-layer MLP head + sigmoid.

    Ref layout (all VMEM resident):
      x_tbi (T, B, I), h0 (L, B, H), c0 (L, B, H),
      w_ih0 (I, 4H), w_hh0 (H, 4H), b0 (1, 4H),                 # layer 0
      [w_cat_l (2H, 4H), b_l (1, 4H)] * (num_layers - 1),       # upper layers
      w_fc1 (H, LIN), b_fc1 (1, LIN), w_fc2 (LIN, O), b_fc2 (1, O),
      out (B, O)
    Gate column order everywhere is [i, f, o, g] (re-packed from PyTorch's
    [i, f, g, o] in pack_params()).
    """

    def kernel(*refs):
        x_ref, h0_ref, c0_ref = refs[0], refs[1], refs[2]
        w_ih0_ref, w_hh0_ref, b0_ref = refs[3], refs[4], refs[5]
        n_upper = 2 * (num_layers - 1)
        upper_refs = refs[6:6 + n_upper]
        w1_ref, b1_ref, w2_ref, b2_ref = refs[6 + n_upper:10 + n_upper]
        out_ref = refs[-1]

        T, B, I = x_ref.shape
        H = h0_ref.shape[-1]

        def lstm_step(gates, c):
            # gates: (B, 4H) in [i, f, o, g] column order.
            sig = jax.nn.sigmoid(gates[:, :3 * H])       # i | f | o  (one EUP slab)
            g_g = jnp.tanh(gates[:, 3 * H:])             # g          (one EUP slab)
            i_g = sig[:, :H]
            f_g = sig[:, H:2 * H]
            o_g = sig[:, 2 * H:3 * H]
            c_new = f_g * c + i_g * g_g
            h_new = o_g * jnp.tanh(c_new)
            return h_new, c_new

        # ---- Layer 0: hoisted input projection (one MXU push for all T steps),
        #      bias folded in once. Only h @ W_hh stays on the serial chain. ----
        x = x_ref[...]                                   # (T, B, I), already f32
        xw = jnp.dot(x.reshape(T * B, I), w_ih0_ref[...],
                     preferred_element_type=jnp.float32) + b0_ref[...]   # (T*B, 4H)

        w_hh0 = w_hh0_ref[...]                           # (H, 4H)
        h = h0_ref[0]                                    # (B, H)
        c = c0_ref[0]
        outs = []                                        # per-step h, no stacking
        for t in range(T):                               # static -> fully unrolled
            gates = xw[t * B:(t + 1) * B, :] + jnp.dot(
                h, w_hh0, preferred_element_type=jnp.float32)
            h, c = lstm_step(gates, c)
            outs.append(h)

        # ---- Upper layers: one fused [x_t ; h] @ [W_ih ; W_hh] push per step.
        #      Inputs come straight from the previous layer's per-step list
        #      (no (B,T,H) stack / reslice).  The single-basic-block trace lets
        #      the scheduler overlap this chain with the layer below. ----
        for layer in range(1, num_layers):
            w_cat = upper_refs[2 * (layer - 1)][...]                  # (2H, 4H)
            bias = jnp.broadcast_to(upper_refs[2 * (layer - 1) + 1][...],
                                    (B, 4 * H))                       # hoisted once
            h = h0_ref[layer]
            c = c0_ref[layer]
            new_outs = []
            for t in range(T):
                xh = jnp.concatenate([outs[t], h], axis=-1)           # (B, 2H)
                gates = jnp.dot(xh, w_cat,
                                preferred_element_type=jnp.float32) + bias
                h, c = lstm_step(gates, c)
                new_outs.append(h)
            outs = new_outs

        # ---- Head: Linear -> Dropout -> Linear -> Dropout -> Sigmoid
        # (last-step hidden of the top layer == outputs[:, -1, :]).
        # TODO(synk): Dropout(p=0.2) is eval-mode identity here (no RNG masking).
        z1 = jnp.dot(h, w1_ref[...], preferred_element_type=jnp.float32) + b1_ref[...]
        z2 = jnp.dot(z1, w2_ref[...], preferred_element_type=jnp.float32) + b2_ref[...]
        out_ref[...] = jax.nn.sigmoid(z2).astype(out_ref.dtype)
        # NOTE: out last-dim (4) < 128 -> masked store; single store per call, noise.

    return kernel


# ----------------------------------------------------------------------------
# Wrapper
# ----------------------------------------------------------------------------
def lstm_predictor_forward(x, initial_h, initial_c, lstm_params, head_params,
                           out_features):
    """x: (B, T, in_features); initial_h/c: (num_layers, B, H).

    lstm_params / head_params must come from pack_params() (kernel layout:
    pre-transposed weights, [i,f,o,g] gate columns, fused upper-layer weights).
    """
    num_layers = initial_h.shape[0]
    B = x.shape[0]

    # Layout plumbing outside the kernel: time-major so the hoisted projection
    # slices contiguous (B, 4H) rows per step.
    x_tbi = jnp.transpose(x, (1, 0, 2))                  # (T, B, I)

    flat = []
    for p in lstm_params:
        flat += list(p)
    flat += list(head_params)

    operands = [x_tbi, initial_h, initial_c] + flat
    vmem = pl.BlockSpec(memory_space=pltpu.MemorySpace.VMEM)

    # Everything fits in VMEM by a huge margin -> no grid / tiling / manual DMA.
    return pl.pallas_call(
        _make_lstm_predictor_kernel(num_layers),
        out_shape=jax.ShapeDtypeStruct((B, out_features), jnp.float32),
        in_specs=[vmem] * len(operands),
        out_specs=vmem,
    )(*operands)


# ----------------------------------------------------------------------------
# Parameter handling
# ----------------------------------------------------------------------------
def init_torch_layout_params(key, in_features, hidden_size, num_layers,
                             out_features, liner_size):
    """Random params in *PyTorch layout*: LSTM weights (4H, D) with gate rows
    ordered [i, f, g, o]; Linear weights (out, in)."""
    keys = jax.random.split(key, 4 * num_layers + 4)
    stdv = 1.0 / jnp.sqrt(hidden_size)

    lstm = []
    k = 0
    for layer in range(num_layers):
        d_in = in_features if layer == 0 else hidden_size
        w_ih = jax.random.uniform(keys[k], (4 * hidden_size, d_in),
                                  minval=-stdv, maxval=stdv); k += 1
        w_hh = jax.random.uniform(keys[k], (4 * hidden_size, hidden_size),
                                  minval=-stdv, maxval=stdv); k += 1
        b_ih = jax.random.uniform(keys[k], (4 * hidden_size,),
                                  minval=-stdv, maxval=stdv); k += 1
        b_hh = jax.random.uniform(keys[k], (4 * hidden_size,),
                                  minval=-stdv, maxval=stdv); k += 1
        lstm.append((w_ih.astype(jnp.float32), w_hh.astype(jnp.float32),
                     b_ih.astype(jnp.float32), b_hh.astype(jnp.float32)))

    s1 = 1.0 / jnp.sqrt(hidden_size)
    w1 = jax.random.uniform(keys[k], (liner_size, hidden_size), minval=-s1, maxval=s1); k += 1
    b1 = jax.random.uniform(keys[k], (liner_size,), minval=-s1, maxval=s1); k += 1
    s2 = 1.0 / jnp.sqrt(liner_size)
    w2 = jax.random.uniform(keys[k], (out_features, liner_size), minval=-s2, maxval=s2); k += 1
    b2 = jax.random.uniform(keys[k], (out_features,), minval=-s2, maxval=s2); k += 1

    head = (w1.astype(jnp.float32), b1.astype(jnp.float32),
            w2.astype(jnp.float32), b2.astype(jnp.float32))
    return lstm, head


def pack_params(pt_lstm, pt_head, hidden_size):
    """PyTorch-layout params -> kernel layout.

    * gate rows permuted [i,f,g,o] -> [i,f,o,g], then transposed to (D_in, 4H)
    * b_ih + b_hh folded into a single (1, 4H) bias
    * layers > 0: [W_ih ; W_hh] fused into one (2H, 4H) weight
    * head weights transposed to (in, out), biases reshaped to (1, out)
    The permutation lives ONLY here, so any checkpoint-loading path that uses
    pack_params() stays consistent with the kernel.
    """
    H = hidden_size
    perm = jnp.concatenate([jnp.arange(0, H), jnp.arange(H, 2 * H),
                            jnp.arange(3 * H, 4 * H), jnp.arange(2 * H, 3 * H)])

    packed_lstm = []
    for layer, (w_ih, w_hh, b_ih, b_hh) in enumerate(pt_lstm):
        w_ih_p = w_ih[perm].T.astype(jnp.float32)        # (D_in, 4H)
        w_hh_p = w_hh[perm].T.astype(jnp.float32)        # (H, 4H)
        b = (b_ih + b_hh)[perm].reshape(1, -1).astype(jnp.float32)
        if layer == 0:
            packed_lstm.append((w_ih_p, w_hh_p, b))
        else:
            packed_lstm.append((jnp.concatenate([w_ih_p, w_hh_p], axis=0), b))

    w1, b1, w2, b2 = pt_head
    packed_head = (w1.T.astype(jnp.float32), b1.reshape(1, -1).astype(jnp.float32),
                   w2.T.astype(jnp.float32), b2.reshape(1, -1).astype(jnp.float32))
    return packed_lstm, packed_head


# ----------------------------------------------------------------------------
# Pure-JAX reference (PyTorch semantics, [i,f,g,o] gate order) for validation
# ----------------------------------------------------------------------------
def reference_forward(x, h0, c0, pt_lstm, pt_head):
    B, T, _ = x.shape
    H = h0.shape[-1]
    layer_in = x
    h = None
    for l, (w_ih, w_hh, b_ih, b_hh) in enumerate(pt_lstm):
        h, c = h0[l], c0[l]
        outs = []
        for t in range(T):
            g = layer_in[:, t, :] @ w_ih.T + h @ w_hh.T + b_ih + b_hh
            i_g = jax.nn.sigmoid(g[:, :H])
            f_g = jax.nn.sigmoid(g[:, H:2 * H])
            g_g = jnp.tanh(g[:, 2 * H:3 * H])
            o_g = jax.nn.sigmoid(g[:, 3 * H:])
            c = f_g * c + i_g * g_g
            h = o_g * jnp.tanh(c)
            outs.append(h)
        layer_in = jnp.stack(outs, axis=1)
    w1, b1, w2, b2 = pt_head
    return jax.nn.sigmoid((h @ w1.T + b1) @ w2.T + b2)


# ----------------------------------------------------------------------------
if __name__ == "__main__":
    # LSTMPredictor(in_features=8, hidden_size=32, num_layers=2,
    #               out_features=4, liner_size=32, batch_size=2)
    B, T, IN = 2, 8, 8
    HID, LAYERS, OUT, LIN = 32, 2, 4, 32

    root = jax.random.PRNGKey(0)
    kx, kh, kc, kp = jax.random.split(root, 4)

    x = jax.random.normal(kx, (B, T, IN), dtype=jnp.float32)
    initial_h = jax.random.normal(kh, (LAYERS, B, HID), dtype=jnp.float32)
    initial_c = jax.random.normal(kc, (LAYERS, B, HID), dtype=jnp.float32)

    pt_lstm, pt_head = init_torch_layout_params(kp, IN, HID, LAYERS, OUT, LIN)
    lstm_params, head_params = pack_params(pt_lstm, pt_head, HID)

    out = lstm_predictor_forward(x, initial_h, initial_c, lstm_params,
                                 head_params, OUT)
    out = jax.block_until_ready(out)

    assert out.shape == (B, OUT), out.shape
    assert bool(jnp.all(jnp.isfinite(out)))
    assert bool(jnp.all((out >= 0.0) & (out <= 1.0)))   # sigmoid output range

    # Structural correctness check (gate permutation / bias folding / fused
    # weights) against a pure-JAX PyTorch-semantics reference.  Loose tolerance
    # to absorb MXU vs. XLA f32 matmul precision differences.
    ref = jax.block_until_ready(reference_forward(x, initial_h, initial_c,
                                                  pt_lstm, pt_head))
    assert bool(jnp.all(jnp.abs(out - ref) < 1e-2)), float(jnp.max(jnp.abs(out - ref)))

    print("KERNEL_OK")
</pallas_src>

<mosaic_0001>
module attributes {stable_mosaic.version = 11 : i64} {
  func.func @kernel(%arg0: memref<8x2x8xf32, #tpu.memory_space<vmem>>, %arg1: memref<2x2x32xf32, #tpu.memory_space<vmem>>, %arg2: memref<2x2x32xf32, #tpu.memory_space<vmem>>, %arg3: memref<8x128xf32, #tpu.memory_space<vmem>>, %arg4: memref<32x128xf32, #tpu.memory_space<vmem>>, %arg5: memref<1x128xf32, #tpu.memory_space<vmem>>, %arg6: memref<64x128xf32, #tpu.memory_space<vmem>>, %arg7: memref<1x128xf32, #tpu.memory_space<vmem>>, %arg8: memref<32x32xf32, #tpu.memory_space<vmem>>, %arg9: memref<1x32xf32, #tpu.memory_space<vmem>>, %arg10: memref<32x4xf32, #tpu.memory_space<vmem>>, %arg11: memref<1x4xf32, #tpu.memory_space<vmem>>, %arg12: memref<2x4xf32, #tpu.memory_space<vmem>>) attributes {dimension_semantics = [], scalar_prefetch = 0 : i64, scratch_operands = 0 : i64, tpu.core_type = #tpu.core_type<tc>} {
    %c0 = arith.constant 0 : index
    %c0_0 = arith.constant 0 : index
    %c0_1 = arith.constant 0 : index
    %0 = vector.load %arg0[%c0, %c0_0, %c0_1] : memref<8x2x8xf32, #tpu.memory_space<vmem>>, vector<8x2x8xf32>
    %1 = vector.shape_cast %0 : vector<8x2x8xf32> to vector<16x8xf32>
    %c0_2 = arith.constant 0 : index
    %c0_3 = arith.constant 0 : index
    %2 = vector.load %arg3[%c0_2, %c0_3] : memref<8x128xf32, #tpu.memory_space<vmem>>, vector<8x128xf32>
    %cst = arith.constant dense<0.000000e+00> : vector<16x128xf32>
    %3 = tpu.matmul %1, %2, %cst {dimension_numbers = #tpu.dot_dimension_numbers<[1], [0], [0], [1], [0, 0, 1, 1], [], []>} : vector<16x8xf32>, vector<8x128xf32>, vector<16x128xf32> -> vector<16x128xf32>
    %c0_4 = arith.constant 0 : index
    %c0_5 = arith.constant 0 : index
    %4 = vector.load %arg5[%c0_4, %c0_5] : memref<1x128xf32, #tpu.memory_space<vmem>>, vector<1x128xf32>
    %5 = vector.broadcast %4 : vector<1x128xf32> to vector<16x128xf32>
    %6 = arith.addf %3, %5 : vector<16x128xf32>
    %c0_6 = arith.constant 0 : index
    %c0_7 = arith.constant 0 : index
    %7 = vector.load %arg4[%c0_6, %c0_7] : memref<32x128xf32, #tpu.memory_space<vmem>>, vector<32x128xf32>
    %c0_8 = arith.constant 0 : index
    %c0_9 = arith.constant 0 : index
    %c0_10 = arith.constant 0 : index
    %8 = vector.load %arg1[%c0_8, %c0_9, %c0_10] : memref<2x2x32xf32, #tpu.memory_space<vmem>>, vector<1x2x32xf32>
    %9 = vector.shape_cast %8 : vector<1x2x32xf32> to vector<2x32xf32>
    %c0_11 = arith.constant 0 : index
    %c0_12 = arith.constant 0 : index
    %c0_13 = arith.constant 0 : index
    %10 = vector.load %arg2[%c0_11, %c0_12, %c0_13] : memref<2x2x32xf32, #tpu.memory_space<vmem>>, vector<1x2x32xf32>
    %11 = vector.shape_cast %10 : vector<1x2x32xf32> to vector<2x32xf32>
    %12 = vector.extract_strided_slice %6 {offsets = [0, 0], sizes = [2, 128], strides = [1, 1]} : vector<16x128xf32> to vector<2x128xf32>
    %cst_14 = arith.constant dense<0.000000e+00> : vector<2x128xf32>
    %13 = tpu.matmul %9, %7, %cst_14 {dimension_numbers = #tpu.dot_dimension_numbers<[1], [0], [0], [1], [0, 0, 1, 1], [], []>} : vector<2x32xf32>, vector<32x128xf32>, vector<2x128xf32> -> vector<2x128xf32>
    %14 = arith.addf %12, %13 : vector<2x128xf32>
    %15 = vector.extract_strided_slice %14 {offsets = [0, 0], sizes = [2, 96], strides = [1, 1]} : vector<2x128xf32> to vector<2x96xf32>
    %16 = arith.negf %15 : vector<2x96xf32>
    %17 = math.exp %16 : vector<2x96xf32>
    %cst_15 = arith.constant 1.000000e+00 : f32
    %18 = vector.broadcast %cst_15 : f32 to vector<2x96xf32>
    %19 = arith.addf %18, %17 : vector<2x96xf32>
    %20 = arith.divf %18, %19 : vector<2x96xf32>
    %21 = vector.extract_strided_slice %14 {offsets = [0, 96], sizes = [2, 32], strides = [1, 1]} : vector<2x128xf32> to vector<2x32xf32>
    %22 = math.tanh %21 : vector<2x32xf32>
    %23 = vector.extract_strided_slice %20 {offsets = [0, 0], sizes = [2, 32], strides = [1, 1]} : vector<2x96xf32> to vector<2x32xf32>
    %24 = vector.extract_strided_slice %20 {offsets = [0, 32], sizes = [2, 32], strides = [1, 1]} : vector<2x96xf32> to vector<2x32xf32>
    %25 = vector.extract_strided_slice %20 {offsets = [0, 64], sizes = [2, 32], strides = [1, 1]} : vector<2x96xf32> to vector<2x32xf32>
    %26 = arith.mulf %24, %11 : vector<2x32xf32>
    %27 = arith.mulf %23, %22 : vector<2x32xf32>
    %28 = arith.addf %26, %27 : vector<2x32xf32>
    %29 = math.tanh %28 : vector<2x32xf32>
    %30 = arith.mulf %25, %29 : vector<2x32xf32>
    %31 = vector.extract_strided_slice %6 {offsets = [2, 0], sizes = [2, 128], strides = [1, 1]} : vector<16x128xf32> to vector<2x128xf32>
    %cst_16 = arith.constant dense<0.000000e+00> : vector<2x128xf32>
    %32 = tpu.matmul %30, %7, %cst_16 {dimension_numbers = #tpu.dot_dimension_numbers<[1], [0], [0], [1], [0, 0, 1, 1], [], []>} : vector<2x32xf32>, vector<32x128xf32>, vector<2x128xf32> -> vector<2x128xf32>
    %33 = arith.addf %31, %32 : vector<2x128xf32>
    %34 = vector.extract_strided_slice %33 {offsets = [0, 0], sizes = [2, 96], strides = [1, 1]} : vector<2x128xf32> to vector<2x96xf32>
    %35 = arith.negf %34 : vector<2x96xf32>
    %36 = math.exp %35 : vector<2x96xf32>
    %cst_17 = arith.constant 1.000000e+00 : f32
    %37 = vector.broadcast %cst_17 : f32 to vector<2x96xf32>
    %38 = arith.addf %37, %36 : vector<2x96xf32>
    %39 = arith.divf %37, %38 : vector<2x96xf32>
    %40 = vector.extract_strided_slice %33 {offsets = [0, 96], sizes = [2, 32], strides = [1, 1]} : vector<2x128xf32> to vector<2x32xf32>
    %41 = math.tanh %40 : vector<2x32xf32>
    %42 = vector.extract_strided_slice %39 {offsets = [0, 0], sizes = [2, 32], strides = [1, 1]} : vector<2x96xf32> to vector<2x32xf32>
    %43 = vector.extract_strided_slice %39 {offsets = [0, 32], sizes = [2, 32], strides = [1, 1]} : vector<2x96xf32> to vector<2x32xf32>
    %44 = vector.extract_strided_slice %39 {offsets = [0, 64], sizes = [2, 32], strides = [1, 1]} : vector<2x96xf32> to vector<2x32xf32>
    %45 = arith.mulf %43, %28 : vector<2x32xf32>
    %46 = arith.mulf %42, %41 : vector<2x32xf32>
    %47 = arith.addf %45, %46 : vector<2x32xf32>
    %48 = math.tanh %47 : vector<2x32xf32>
    %49 = arith.mulf %44, %48 : vector<2x32xf32>
    %50 = vector.extract_strided_slice %6 {offsets = [4, 0], sizes = [2, 128], strides = [1, 1]} : vector<16x128xf32> to vector<2x128xf32>
    %cst_18 = arith.constant dense<0.000000e+00> : vector<2x128xf32>
    %51 = tpu.matmul %49, %7, %cst_18 {dimension_numbers = #tpu.dot_dimension_numbers<[1], [0], [0], [1], [0, 0, 1, 1], [], []>} : vector<2x32xf32>, vector<32x128xf32>, vector<2x128xf32> -> vector<2x128xf32>
    %52 = arith.addf %50, %51 : vector<2x128xf32>
    %53 = vector.extract_strided_slice %52 {offsets = [0, 0], sizes = [2, 96], strides = [1, 1]} : vector<2x128xf32> to vector<2x96xf32>
    %54 = arith.negf %53 : vector<2x96xf32>
    %55 = math.exp %54 : vector<2x96xf32>
    %cst_19 = arith.constant 1.000000e+00 : f32
    %56 = vector.broadcast %cst_19 : f32 to vector<2x96xf32>
    %57 = arith.addf %56, %55 : vector<2x96xf32>
    %58 = arith.divf %56, %57 : vector<2x96xf32>
    %59 = vector.extract_strided_slice %52 {offsets = [0, 96], sizes = [2, 32], strides = [1, 1]} : vector<2x128xf32> to vector<2x32xf32>
    %60 = math.tanh %59 : vector<2x32xf32>
    %61 = vector.extract_strided_slice %58 {offsets = [0, 0], sizes = [2, 32], strides = [1, 1]} : vector<2x96xf32> to vector<2x32xf32>
    %62 = vector.extract_strided_slice %58 {offsets = [0, 32], sizes = [2, 32], strides = [1, 1]} : vector<2x96xf32> to vector<2x32xf32>
    %63 = vector.extract_strided_slice %58 {offsets = [0, 64], sizes = [2, 32], strides = [1, 1]} : vector<2x96xf32> to vector<2x32xf32>
    %64 = arith.mulf %62, %47 : vector<2x32xf32>
    %65 = arith.mulf %61, %60 : vector<2x32xf32>
    %66 = arith.addf %64, %65 : vector<2x32xf32>
    %67 = math.tanh %66 : vector<2x32xf32>
    %68 = arith.mulf %63, %67 : vector<2x32xf32>
    %69 = vector.extract_strided_slice %6 {offsets = [6, 0], sizes = [2, 128], strides = [1, 1]} : vector<16x128xf32> to vector<2x128xf32>
    %cst_20 = arith.constant dense<0.000000e+00> : vector<2x128xf32>
    %70 = tpu.matmul %68, %7, %cst_20 {dimension_numbers = #tpu.dot_dimension_numbers<[1], [0], [0], [1], [0, 0, 1, 1], [], []>} : vector<2x32xf32>, vector<32x128xf32>, vector<2x128xf32> -> vector<2x128xf32>
    %71 = arith.addf %69, %70 : vector<2x128xf32>
    %72 = vector.extract_strided_slice %71 {offsets = [0, 0], sizes = [2, 96], strides = [1, 1]} : vector<2x128xf32> to vector<2x96xf32>
    %73 = arith.negf %72 : vector<2x96xf32>
    %74 = math.exp %73 : vector<2x96xf32>
    %cst_21 = arith.constant 1.000000e+00 : f32
    %75 = vector.broadcast %cst_21 : f32 to vector<2x96xf32>
    %76 = arith.addf %75, %74 : vector<2x96xf32>
    %77 = arith.divf %75, %76 : vector<2x96xf32>
    %78 = vector.extract_strided_slice %71 {offsets = [0, 96], sizes = [2, 32], strides = [1, 1]} : vector<2x128xf32> to vector<2x32xf32>
    %79 = math.tanh %78 : vector<2x32xf32>
    %80 = vector.extract_strided_slice %77 {offsets = [0, 0], sizes = [2, 32], strides = [1, 1]} : vector<2x96xf32> to vector<2x32xf32>
    %81 = vector.extract_strided_slice %77 {offsets = [0, 32], sizes = [2, 32], strides = [1, 1]} : vector<2x96xf32> to vector<2x32xf32>
    %82 = vector.extract_strided_slice %77 {offsets = [0, 64], sizes = [2, 32], strides = [1, 1]} : vector<2x96xf32> to vector<2x32xf32>
    %83 = arith.mulf %81, %66 : vector<2x32xf32>
    %84 = arith.mulf %80, %79 : vector<2x32xf32>
    %85 = arith.addf %83, %84 : vector<2x32xf32>
    %86 = math.tanh %85 : vector<2x32xf32>
    %87 = arith.mulf %82, %86 : vector<2x32xf32>
    %88 = vector.extract_strided_slice %6 {offsets = [8, 0], sizes = [2, 128], strides = [1, 1]} : vector<16x128xf32> to vector<2x128xf32>
    %cst_22 = arith.constant dense<0.000000e+00> : vector<2x128xf32>
    %89 = tpu.matmul %87, %7, %cst_22 {dimension_numbers = #tpu.dot_dimension_numbers<[1], [0], [0], [1], [0, 0, 1, 1], [], []>} : vector<2x32xf32>, vector<32x128xf32>, vector<2x128xf32> -> vector<2x128xf32>
    %90 = arith.addf %88, %89 : vector<2x128xf32>
    %91 = vector.extract_strided_slice %90 {offsets = [0, 0], sizes = [2, 96], strides = [1, 1]} : vector<2x128xf32> to vector<2x96xf32>
    %92 = arith.negf %91 : vector<2x96xf32>
    %93 = math.exp %92 : vector<2x96xf32>
    %cst_23 = arith.constant 1.000000e+00 : f32
    %94 = vector.broadcast %cst_23 : f32 to vector<2x96xf32>
    %95 = arith.addf %94, %93 : vector<2x96xf32>
    %96 = arith.divf %94, %95 : vector<2x96xf32>
    %97 = vector.extract_strided_slice %90 {offsets = [0, 96], sizes = [2, 32], strides = [1, 1]} : vector<2x128xf32> to vector<2x32xf32>
    %98 = math.tanh %97 : vector<2x32xf32>
    %99 = vector.extract_strided_slice %96 {offsets = [0, 0], sizes = [2, 32], strides = [1, 1]} : vector<2x96xf32> to vector<2x32xf32>
    %100 = vector.extract_strided_slice %96 {offsets = [0, 32], sizes = [2, 32], strides = [1, 1]} : vector<2x96xf32> to vector<2x32xf32>
    %101 = vector.extract_strided_slice %96 {offsets = [0, 64], sizes = [2, 32], strides = [1, 1]} : vector<2x96xf32> to vector<2x32xf32>
    %102 = arith.mulf %100, %85 : vector<2x32xf32>
    %103 = arith.mulf %99, %98 : vector<2x32xf32>
    %104 = arith.addf %102, %103 : vector<2x32xf32>
    %105 = math.tanh %104 : vector<2x32xf32>
    %106 = arith.mulf %101, %105 : vector<2x32xf32>
    %107 = vector.extract_strided_slice %6 {offsets = [10, 0], sizes = [2, 128], strides = [1, 1]} : vector<16x128xf32> to vector<2x128xf32>
    %cst_24 = arith.constant dense<0.000000e+00> : vector<2x128xf32>
    %108 = tpu.matmul %106, %7, %cst_24 {dimension_numbers = #tpu.dot_dimension_numbers<[1], [0], [0], [1], [0, 0, 1, 1], [], []>} : vector<2x32xf32>, vector<32x128xf32>, vector<2x128xf32> -> vector<2x128xf32>
    %109 = arith.addf %107, %108 : vector<2x128xf32>
    %110 = vector.extract_strided_slice %109 {offsets = [0, 0], sizes = [2, 96], strides = [1, 1]} : vector<2x128xf32> to vector<2x96xf32>
    %111 = arith.negf %110 : vector<2x96xf32>
    %112 = math.exp %111 : vector<2x96xf32>
    %cst_25 = arith.constant 1.000000e+00 : f32
    %113 = vector.broadcast %cst_25 : f32 to vector<2x96xf32>
    %114 = arith.addf %113, %112 : vector<2x96xf32>
    %115 = arith.divf %113, %114 : vector<2x96xf32>
    %116 = vector.extract_strided_slice %109 {offsets = [0, 96], sizes = [2, 32], strides = [1, 1]} : vector<2x128xf32> to vector<2x32xf32>
    %117 = math.tanh %116 : vector<2x32xf32>
    %118 = vector.extract_strided_slice %115 {offsets = [0, 0], sizes = [2, 32], strides = [1, 1]} : vector<2x96xf32> to vector<2x32xf32>
    %119 = vector.extract_strided_slice %115 {offsets = [0, 32], sizes = [2, 32], strides = [1, 1]} : vector<2x96xf32> to vector<2x32xf32>
    %120 = vector.extract_strided_slice %115 {offsets = [0, 64], sizes = [2, 32], strides = [1, 1]} : vector<2x96xf32> to vector<2x32xf32>
    %121 = arith.mulf %119, %104 : vector<2x32xf32>
    %122 = arith.mulf %118, %117 : vector<2x32xf32>
    %123 = arith.addf %121, %122 : vector<2x32xf32>
    %124 = math.tanh %123 : vector<2x32xf32>
    %125 = arith.mulf %120, %124 : vector<2x32xf32>
    %126 = vector.extract_strided_slice %6 {offsets = [12, 0], sizes = [2, 128], strides = [1, 1]} : vector<16x128xf32> to vector<2x128xf32>
    %cst_26 = arith.constant dense<0.000000e+00> : vector<2x128xf32>
    %127 = tpu.matmul %125, %7, %cst_26 {dimension_numbers = #tpu.dot_dimension_numbers<[1], [0], [0], [1], [0, 0, 1, 1], [], []>} : vector<2x32xf32>, vector<32x128xf32>, vector<2x128xf32> -> vector<2x128xf32>
    %128 = arith.addf %126, %127 : vector<2x128xf32>
    %129 = vector.extract_strided_slice %128 {offsets = [0, 0], sizes = [2, 96], strides = [1, 1]} : vector<2x128xf32> to vector<2x96xf32>
    %130 = arith.negf %129 : vector<2x96xf32>
    %131 = math.exp %130 : vector<2x96xf32>
    %cst_27 = arith.constant 1.000000e+00 : f32
    %132 = vector.broadcast %cst_27 : f32 to vector<2x96xf32>
    %133 = arith.addf %132, %131 : vector<2x96xf32>
    %134 = arith.divf %132, %133 : vector<2x96xf32>
    %135 = vector.extract_strided_slice %128 {offsets = [0, 96], sizes = [2, 32], strides = [1, 1]} : vector<2x128xf32> to vector<2x32xf32>
    %136 = math.tanh %135 : vector<2x32xf32>
    %137 = vector.extract_strided_slice %134 {offsets = [0, 0], sizes = [2, 32], strides = [1, 1]} : vector<2x96xf32> to vector<2x32xf32>
    %138 = vector.extract_strided_slice %134 {offsets = [0, 32], sizes = [2, 32], strides = [1, 1]} : vector<2x96xf32> to vector<2x32xf32>
    %139 = vector.extract_strided_slice %134 {offsets = [0, 64], sizes = [2, 32], strides = [1, 1]} : vector<2x96xf32> to vector<2x32xf32>
    %140 = arith.mulf %138, %123 : vector<2x32xf32>
    %141 = arith.mulf %137, %136 : vector<2x32xf32>
    %142 = arith.addf %140, %141 : vector<2x32xf32>
    %143 = math.tanh %142 : vector<2x32xf32>
    %144 = arith.mulf %139, %143 : vector<2x32xf32>
    %145 = vector.extract_strided_slice %6 {offsets = [14, 0], sizes = [2, 128], strides = [1, 1]} : vector<16x128xf32> to vector<2x128xf32>
    %cst_28 = arith.constant dense<0.000000e+00> : vector<2x128xf32>
    %146 = tpu.matmul %144, %7, %cst_28 {dimension_numbers = #tpu.dot_dimension_numbers<[1], [0], [0], [1], [0, 0, 1, 1], [], []>} : vector<2x32xf32>, vector<32x128xf32>, vector<2x128xf32> -> vector<2x128xf32>
    %147 = arith.addf %145, %146 : vector<2x128xf32>
    %148 = vector.extract_strided_slice %147 {offsets = [0, 0], sizes = [2, 96], strides = [1, 1]} : vector<2x128xf32> to vector<2x96xf32>
    %149 = arith.negf %148 : vector<2x96xf32>
    %150 = math.exp %149 : vector<2x96xf32>
    %cst_29 = arith.constant 1.000000e+00 : f32
    %151 = vector.broadcast %cst_29 : f32 to vector<2x96xf32>
    %152 = arith.addf %151, %150 : vector<2x96xf32>
    %153 = arith.divf %151, %152 : vector<2x96xf32>
    %154 = vector.extract_strided_slice %147 {offsets = [0, 96], sizes = [2, 32], strides = [1, 1]} : vector<2x128xf32> to vector<2x32xf32>
    %155 = math.tanh %154 : vector<2x32xf32>
    %156 = vector.extract_strided_slice %153 {offsets = [0, 0], sizes = [2, 32], strides = [1, 1]} : vector<2x96xf32> to vector<2x32xf32>
    %157 = vector.extract_strided_slice %153 {offsets = [0, 32], sizes = [2, 32], strides = [1, 1]} : vector<2x96xf32> to vector<2x32xf32>
    %158 = vector.extract_strided_slice %153 {offsets = [0, 64], sizes = [2, 32], strides = [1, 1]} : vector<2x96xf32> to vector<2x32xf32>
    %159 = arith.mulf %157, %142 : vector<2x32xf32>
    %160 = arith.mulf %156, %155 : vector<2x32xf32>
    %161 = arith.addf %159, %160 : vector<2x32xf32>
    %162 = math.tanh %161 : vector<2x32xf32>
    %163 = arith.mulf %158, %162 : vector<2x32xf32>
    %c0_30 = arith.constant 0 : index
    %c0_31 = arith.constant 0 : index
    %164 = vector.load %arg6[%c0_30, %c0_31] : memref<64x128xf32, #tpu.memory_space<vmem>>, vector<64x128xf32>
    %c0_32 = arith.constant 0 : index
    %c0_33 = arith.constant 0 : index
    %165 = vector.load %arg7[%c0_32, %c0_33] : memref<1x128xf32, #tpu.memory_space<vmem>>, vector<1x128xf32>
    %166 = vector.shape_cast %165 : vector<1x128xf32> to vector<1x128xf32>
    %167 = vector.broadcast %166 : vector<1x128xf32> to vector<2x128xf32>
    %c1 = arith.constant 1 : index
    %c0_34 = arith.constant 0 : index
    %c0_35 = arith.constant 0 : index
    %168 = vector.load %arg1[%c1, %c0_34, %c0_35] : memref<2x2x32xf32, #tpu.memory_space<vmem>>, vector<1x2x32xf32>
    %169 = vector.shape_cast %168 : vector<1x2x32xf32> to vector<2x32xf32>
    %c1_36 = arith.constant 1 : index
    %c0_37 = arith.constant 0 : index
    %c0_38 = arith.constant 0 : index
    %170 = vector.load %arg2[%c1_36, %c0_37, %c0_38] : memref<2x2x32xf32, #tpu.memory_space<vmem>>, vector<1x2x32xf32>
    %171 = vector.shape_cast %170 : vector<1x2x32xf32> to vector<2x32xf32>
    %172 = tpu.concatenate %30, %169 in 1 : vector<2x32xf32>, vector<2x32xf32> -> vector<2x64xf32>
    %cst_39 = arith.constant dense<0.000000e+00> : vector<2x128xf32>
    %173 = tpu.matmul %172, %164, %cst_39 {dimension_numbers = #tpu.dot_dimension_numbers<[1], [0], [0], [1], [0, 0, 1, 1], [], []>} : vector<2x64xf32>, vector<64x128xf32>, vector<2x128xf32> -> vector<2x128xf32>
    %174 = arith.addf %173, %167 : vector<2x128xf32>
    %175 = vector.extract_strided_slice %174 {offsets = [0, 0], sizes = [2, 96], strides = [1, 1]} : vector<2x128xf32> to vector<2x96xf32>
    %176 = arith.negf %175 : vector<2x96xf32>
    %177 = math.exp %176 : vector<2x96xf32>
    %cst_40 = arith.constant 1.000000e+00 : f32
    %178 = vector.broadcast %cst_40 : f32 to vector<2x96xf32>
    %179 = arith.addf %178, %177 : vector<2x96xf32>
    %180 = arith.divf %178, %179 : vector<2x96xf32>
    %181 = vector.extract_strided_slice %174 {offsets = [0, 96], sizes = [2, 32], strides = [1, 1]} : vector<2x128xf32> to vector<2x32xf32>
    %182 = math.tanh %181 : vector<2x32xf32>
    %183 = vector.extract_strided_slice %180 {offsets = [0, 0], sizes = [2, 32], strides = [1, 1]} : vector<2x96xf32> to vector<2x32xf32>
    %184 = vector.extract_strided_slice %180 {offsets = [0, 32], sizes = [2, 32], strides = [1, 1]} : vector<2x96xf32> to vector<2x32xf32>
    %185 = vector.extract_strided_slice %180 {offsets = [0, 64], sizes = [2, 32], strides = [1, 1]} : vector<2x96xf32> to vector<2x32xf32>
    %186 = arith.mulf %184, %171 : vector<2x32xf32>
    %187 = arith.mulf %183, %182 : vector<2x32xf32>
    %188 = arith.addf %186, %187 : vector<2x32xf32>
    %189 = math.tanh %188 : vector<2x32xf32>
    %190 = arith.mulf %185, %189 : vector<2x32xf32>
    %191 = tpu.concatenate %49, %190 in 1 : vector<2x32xf32>, vector<2x32xf32> -> vector<2x64xf32>
    %cst_41 = arith.constant dense<0.000000e+00> : vector<2x128xf32>
    %192 = tpu.matmul %191, %164, %cst_41 {dimension_numbers = #tpu.dot_dimension_numbers<[1], [0], [0], [1], [0, 0, 1, 1], [], []>} : vector<2x64xf32>, vector<64x128xf32>, vector<2x128xf32> -> vector<2x128xf32>
    %193 = arith.addf %192, %167 : vector<2x128xf32>
    %194 = vector.extract_strided_slice %193 {offsets = [0, 0], sizes = [2, 96], strides = [1, 1]} : vector<2x128xf32> to vector<2x96xf32>
    %195 = arith.negf %194 : vector<2x96xf32>
    %196 = math.exp %195 : vector<2x96xf32>
    %cst_42 = arith.constant 1.000000e+00 : f32
    %197 = vector.broadcast %cst_42 : f32 to vector<2x96xf32>
    %198 = arith.addf %197, %196 : vector<2x96xf32>
    %199 = arith.divf %197, %198 : vector<2x96xf32>
    %200 = vector.extract_strided_slice %193 {offsets = [0, 96], sizes = [2, 32], strides = [1, 1]} : vector<2x128xf32> to vector<2x32xf32>
    %201 = math.tanh %200 : vector<2x32xf32>
    %202 = vector.extract_strided_slice %199 {offsets = [0, 0], sizes = [2, 32], strides = [1, 1]} : vector<2x96xf32> to vector<2x32xf32>
    %203 = vector.extract_strided_slice %199 {offsets = [0, 32], sizes = [2, 32], strides = [1, 1]} : vector<2x96xf32> to vector<2x32xf32>
    %204 = vector.extract_strided_slice %199 {offsets = [0, 64], sizes = [2, 32], strides = [1, 1]} : vector<2x96xf32> to vector<2x32xf32>
    %205 = arith.mulf %203, %188 : vector<2x32xf32>
    %206 = arith.mulf %202, %201 : vector<2x32xf32>
    %207 = arith.addf %205, %206 : vector<2x32xf32>
    %208 = math.tanh %207 : vector<2x32xf32>
    %209 = arith.mulf %204, %208 : vector<2x32xf32>
    %210 = tpu.concatenate %68, %209 in 1 : vector<2x32xf32>, vector<2x32xf32> -> vector<2x64xf32>
    %cst_43 = arith.constant dense<0.000000e+00> : vector<2x128xf32>
    %211 = tpu.matmul %210, %164, %cst_43 {dimension_numbers = #tpu.dot_dimension_numbers<[1], [0], [0], [1], [0, 0, 1, 1], [], []>} : vector<2x64xf32>, vector<64x128xf32>, vector<2x128xf32> -> vector<2x128xf32>
    %212 = arith.addf %211, %167 : vector<2x128xf32>
    %213 = vector.extract_strided_slice %212 {offsets = [0, 0], sizes = [2, 96], strides = [1, 1]} : vector<2x128xf32> to vector<2x96xf32>
    %214 = arith.negf %213 : vector<2x96xf32>
    %215 = math.exp %214 : vector<2x96xf32>
    %cst_44 = arith.constant 1.000000e+00 : f32
    %216 = vector.broadcast %cst_44 : f32 to vector<2x96xf32>
    %217 = arith.addf %216, %215 : vector<2x96xf32>
    %218 = arith.divf %216, %217 : vector<2x96xf32>
    %219 = vector.extract_strided_slice %212 {offsets = [0, 96], sizes = [2, 32], strides = [1, 1]} : vector<2x128xf32> to vector<2x32xf32>
    %220 = math.tanh %219 : vector<2x32xf32>
    %221 = vector.extract_strided_slice %218 {offsets = [0, 0], sizes = [2, 32], strides = [1, 1]} : vector<2x96xf32> to vector<2x32xf32>
    %222 = vector.extract_strided_slice %218 {offsets = [0, 32], sizes = [2, 32], strides = [1, 1]} : vector<2x96xf32> to vector<2x32xf32>
    %223 = vector.extract_strided_slice %218 {offsets = [0, 64], sizes = [2, 32], strides = [1, 1]} : vector<2x96xf32> to vector<2x32xf32>
    %224 = arith.mulf %222, %207 : vector<2x32xf32>
    %225 = arith.mulf %221, %220 : vector<2x32xf32>
    %226 = arith.addf %224, %225 : vector<2x32xf32>
    %227 = math.tanh %226 : vector<2x32xf32>
    %228 = arith.mulf %223, %227 : vector<2x32xf32>
    %229 = tpu.concatenate %87, %228 in 1 : vector<2x32xf32>, vector<2x32xf32> -> vector<2x64xf32>
    %cst_45 = arith.constant dense<0.000000e+00> : vector<2x128xf32>
    %230 = tpu.matmul %229, %164, %cst_45 {dimension_numbers = #tpu.dot_dimension_numbers<[1], [0], [0], [1], [0, 0, 1, 1], [], []>} : vector<2x64xf32>, vector<64x128xf32>, vector<2x128xf32> -> vector<2x128xf32>
    %231 = arith.addf %230, %167 : vector<2x128xf32>
    %232 = vector.extract_strided_slice %231 {offsets = [0, 0], sizes = [2, 96], strides = [1, 1]} : vector<2x128xf32> to vector<2x96xf32>
    %233 = arith.negf %232 : vector<2x96xf32>
    %234 = math.exp %233 : vector<2x96xf32>
    %cst_46 = arith.constant 1.000000e+00 : f32
    %235 = vector.broadcast %cst_46 : f32 to vector<2x96xf32>
    %236 = arith.addf %235, %234 : vector<2x96xf32>
    %237 = arith.divf %235, %236 : vector<2x96xf32>
    %238 = vector.extract_strided_slice %231 {offsets = [0, 96], sizes = [2, 32], strides = [1, 1]} : vector<2x128xf32> to vector<2x32xf32>
    %239 = math.tanh %238 : vector<2x32xf32>
    %240 = vector.extract_strided_slice %237 {offsets = [0, 0], sizes = [2, 32], strides = [1, 1]} : vector<2x96xf32> to vector<2x32xf32>
    %241 = vector.extract_strided_slice %237 {offsets = [0, 32], sizes = [2, 32], strides = [1, 1]} : vector<2x96xf32> to vector<2x32xf32>
    %242 = vector.extract_strided_slice %237 {offsets = [0, 64], sizes = [2, 32], strides = [1, 1]} : vector<2x96xf32> to vector<2x32xf32>
    %243 = arith.mulf %241, %226 : vector<2x32xf32>
    %244 = arith.mulf %240, %239 : vector<2x32xf32>
    %245 = arith.addf %243, %244 : vector<2x32xf32>
    %246 = math.tanh %245 : vector<2x32xf32>
    %247 = arith.mulf %242, %246 : vector<2x32xf32>
    %248 = tpu.concatenate %106, %247 in 1 : vector<2x32xf32>, vector<2x32xf32> -> vector<2x64xf32>
    %cst_47 = arith.constant dense<0.000000e+00> : vector<2x128xf32>
    %249 = tpu.matmul %248, %164, %cst_47 {dimension_numbers = #tpu.dot_dimension_numbers<[1], [0], [0], [1], [0, 0, 1, 1], [], []>} : vector<2x64xf32>, vector<64x128xf32>, vector<2x128xf32> -> vector<2x128xf32>
    %250 = arith.addf %249, %167 : vector<2x128xf32>
    %251 = vector.extract_strided_slice %250 {offsets = [0, 0], sizes = [2, 96], strides = [1, 1]} : vector<2x128xf32> to vector<2x96xf32>
    %252 = arith.negf %251 : vector<2x96xf32>
    %253 = math.exp %252 : vector<2x96xf32>
    %cst_48 = arith.constant 1.000000e+00 : f32
    %254 = vector.broadcast %cst_48 : f32 to vector<2x96xf32>
    %255 = arith.addf %254, %253 : vector<2x96xf32>
    %256 = arith.divf %254, %255 : vector<2x96xf32>
    %257 = vector.extract_strided_slice %250 {offsets = [0, 96], sizes = [2, 32], strides = [1, 1]} : vector<2x128xf32> to vector<2x32xf32>
    %258 = math.tanh %257 : vector<2x32xf32>
    %259 = vector.extract_strided_slice %256 {offsets = [0, 0], sizes = [2, 32], strides = [1, 1]} : vector<2x96xf32> to vector<2x32xf32>
    %260 = vector.extract_strided_slice %256 {offsets = [0, 32], sizes = [2, 32], strides = [1, 1]} : vector<2x96xf32> to vector<2x32xf32>
    %261 = vector.extract_strided_slice %256 {offsets = [0, 64], sizes = [2, 32], strides = [1, 1]} : vector<2x96xf32> to vector<2x32xf32>
    %262 = arith.mulf %260, %245 : vector<2x32xf32>
    %263 = arith.mulf %259, %258 : vector<2x32xf32>
    %264 = arith.addf %262, %263 : vector<2x32xf32>
    %265 = math.tanh %264 : vector<2x32xf32>
    %266 = arith.mulf %261, %265 : vector<2x32xf32>
    %267 = tpu.concatenate %125, %266 in 1 : vector<2x32xf32>, vector<2x32xf32> -> vector<2x64xf32>
    %cst_49 = arith.constant dense<0.000000e+00> : vector<2x128xf32>
    %268 = tpu.matmul %267, %164, %cst_49 {dimension_numbers = #tpu.dot_dimension_numbers<[1], [0], [0], [1], [0, 0, 1, 1], [], []>} : vector<2x64xf32>, vector<64x128xf32>, vector<2x128xf32> -> vector<2x128xf32>
    %269 = arith.addf %268, %167 : vector<2x128xf32>
    %270 = vector.extract_strided_slice %269 {offsets = [0, 0], sizes = [2, 96], strides = [1, 1]} : vector<2x128xf32> to vector<2x96xf32>
    %271 = arith.negf %270 : vector<2x96xf32>
    %272 = math.exp %271 : vector<2x96xf32>
    %cst_50 = arith.constant 1.000000e+00 : f32
    %273 = vector.broadcast %cst_50 : f32 to vector<2x96xf32>
    %274 = arith.addf %273, %272 : vector<2x96xf32>
    %275 = arith.divf %273, %274 : vector<2x96xf32>
    %276 = vector.extract_strided_slice %269 {offsets = [0, 96], sizes = [2, 32], strides = [1, 1]} : vector<2x128xf32> to vector<2x32xf32>
    %277 = math.tanh %276 : vector<2x32xf32>
    %278 = vector.extract_strided_slice %275 {offsets = [0, 0], sizes = [2, 32], strides = [1, 1]} : vector<2x96xf32> to vector<2x32xf32>
    %279 = vector.extract_strided_slice %275 {offsets = [0, 32], sizes = [2, 32], strides = [1, 1]} : vector<2x96xf32> to vector<2x32xf32>
    %280 = vector.extract_strided_slice %275 {offsets = [0, 64], sizes = [2, 32], strides = [1, 1]} : vector<2x96xf32> to vector<2x32xf32>
    %281 = arith.mulf %279, %264 : vector<2x32xf32>
    %282 = arith.mulf %278, %277 : vector<2x32xf32>
    %283 = arith.addf %281, %282 : vector<2x32xf32>
    %284 = math.tanh %283 : vector<2x32xf32>
    %285 = arith.mulf %280, %284 : vector<2x32xf32>
    %286 = tpu.concatenate %144, %285 in 1 : vector<2x32xf32>, vector<2x32xf32> -> vector<2x64xf32>
    %cst_51 = arith.constant dense<0.000000e+00> : vector<2x128xf32>
    %287 = tpu.matmul %286, %164, %cst_51 {dimension_numbers = #tpu.dot_dimension_numbers<[1], [0], [0], [1], [0, 0, 1, 1], [], []>} : vector<2x64xf32>, vector<64x128xf32>, vector<2x128xf32> -> vector<2x128xf32>
    %288 = arith.addf %287, %167 : vector<2x128xf32>
    %289 = vector.extract_strided_slice %288 {offsets = [0, 0], sizes = [2, 96], strides = [1, 1]} : vector<2x128xf32> to vector<2x96xf32>
    %290 = arith.negf %289 : vector<2x96xf32>
    %291 = math.exp %290 : vector<2x96xf32>
    %cst_52 = arith.constant 1.000000e+00 : f32
    %292 = vector.broadcast %cst_52 : f32 to vector<2x96xf32>
    %293 = arith.addf %292, %291 : vector<2x96xf32>
    %294 = arith.divf %292, %293 : vector<2x96xf32>
    %295 = vector.extract_strided_slice %288 {offsets = [0, 96], sizes = [2, 32], strides = [1, 1]} : vector<2x128xf32> to vector<2x32xf32>
    %296 = math.tanh %295 : vector<2x32xf32>
    %297 = vector.extract_strided_slice %294 {offsets = [0, 0], sizes = [2, 32], strides = [1, 1]} : vector<2x96xf32> to vector<2x32xf32>
    %298 = vector.extract_strided_slice %294 {offsets = [0, 32], sizes = [2, 32], strides = [1, 1]} : vector<2x96xf32> to vector<2x32xf32>
    %299 = vector.extract_strided_slice %294 {offsets = [0, 64], sizes = [2, 32], strides = [1, 1]} : vector<2x96xf32> to vector<2x32xf32>
    %300 = arith.mulf %298, %283 : vector<2x32xf32>
    %301 = arith.mulf %297, %296 : vector<2x32xf32>
    %302 = arith.addf %300, %301 : vector<2x32xf32>
    %303 = math.tanh %302 : vector<2x32xf32>
    %304 = arith.mulf %299, %303 : vector<2x32xf32>
    %305 = tpu.concatenate %163, %304 in 1 : vector<2x32xf32>, vector<2x32xf32> -> vector<2x64xf32>
    %cst_53 = arith.constant dense<0.000000e+00> : vector<2x128xf32>
    %306 = tpu.matmul %305, %164, %cst_53 {dimension_numbers = #tpu.dot_dimension_numbers<[1], [0], [0], [1], [0, 0, 1, 1], [], []>} : vector<2x64xf32>, vector<64x128xf32>, vector<2x128xf32> -> vector<2x128xf32>
    %307 = arith.addf %306, %167 : vector<2x128xf32>
    %308 = vector.extract_strided_slice %307 {offsets = [0, 0], sizes = [2, 96], strides = [1, 1]} : vector<2x128xf32> to vector<2x96xf32>
    %309 = arith.negf %308 : vector<2x96xf32>
    %310 = math.exp %309 : vector<2x96xf32>
    %cst_54 = arith.constant 1.000000e+00 : f32
    %311 = vector.broadcast %cst_54 : f32 to vector<2x96xf32>
    %312 = arith.addf %311, %310 : vector<2x96xf32>
    %313 = arith.divf %311, %312 : vector<2x96xf32>
    %314 = vector.extract_strided_slice %307 {offsets = [0, 96], sizes = [2, 32], strides = [1, 1]} : vector<2x128xf32> to vector<2x32xf32>
    %315 = math.tanh %314 : vector<2x32xf32>
    %316 = vector.extract_strided_slice %313 {offsets = [0, 0], sizes = [2, 32], strides = [1, 1]} : vector<2x96xf32> to vector<2x32xf32>
    %317 = vector.extract_strided_slice %313 {offsets = [0, 32], sizes = [2, 32], strides = [1, 1]} : vector<2x96xf32> to vector<2x32xf32>
    %318 = vector.extract_strided_slice %313 {offsets = [0, 64], sizes = [2, 32], strides = [1, 1]} : vector<2x96xf32> to vector<2x32xf32>
    %319 = arith.mulf %317, %302 : vector<2x32xf32>
    %320 = arith.mulf %316, %315 : vector<2x32xf32>
    %321 = arith.addf %319, %320 : vector<2x32xf32>
    %322 = math.tanh %321 : vector<2x32xf32>
    %323 = arith.mulf %318, %322 : vector<2x32xf32>
    %c0_55 = arith.constant 0 : index
    %c0_56 = arith.constant 0 : index
    %324 = vector.load %arg8[%c0_55, %c0_56] : memref<32x32xf32, #tpu.memory_space<vmem>>, vector<32x32xf32>
    %cst_57 = arith.constant dense<0.000000e+00> : vector<2x32xf32>
    %325 = tpu.matmul %323, %324, %cst_57 {dimension_numbers = #tpu.dot_dimension_numbers<[1], [0], [0], [1], [0, 0, 1, 1], [], []>} : vector<2x32xf32>, vector<32x32xf32>, vector<2x32xf32> -> vector<2x32xf32>
    %c0_58 = arith.constant 0 : index
    %c0_59 = arith.constant 0 : index
    %326 = vector.load %arg9[%c0_58, %c0_59] : memref<1x32xf32, #tpu.memory_space<vmem>>, vector<1x32xf32>
    %327 = vector.broadcast %326 : vector<1x32xf32> to vector<2x32xf32>
    %328 = arith.addf %325, %327 : vector<2x32xf32>
    %c0_60 = arith.constant 0 : index
    %c0_61 = arith.constant 0 : index
    %329 = vector.load %arg10[%c0_60, %c0_61] : memref<32x4xf32, #tpu.memory_space<vmem>>, vector<32x4xf32>
    %cst_62 = arith.constant dense<0.000000e+00> : vector<2x4xf32>
    %330 = tpu.matmul %328, %329, %cst_62 {dimension_numbers = #tpu.dot_dimension_numbers<[1], [0], [0], [1], [0, 0, 1, 1], [], []>} : vector<2x32xf32>, vector<32x4xf32>, vector<2x4xf32> -> vector<2x4xf32>
    %c0_63 = arith.constant 0 : index
    %c0_64 = arith.constant 0 : index
    %331 = vector.load %arg11[%c0_63, %c0_64] : memref<1x4xf32, #tpu.memory_space<vmem>>, vector<1x4xf32>
    %332 = vector.broadcast %331 : vector<1x4xf32> to vector<2x4xf32>
    %333 = arith.addf %330, %332 : vector<2x4xf32>
    %334 = arith.negf %333 : vector<2x4xf32>
    %335 = math.exp %334 : vector<2x4xf32>
    %cst_65 = arith.constant 1.000000e+00 : f32
    %336 = vector.broadcast %cst_65 : f32 to vector<2x4xf32>
    %337 = arith.addf %336, %335 : vector<2x4xf32>
    %338 = arith.divf %336, %337 : vector<2x4xf32>
    %c0_66 = arith.constant 0 : index
    %c0_67 = arith.constant 0 : index
    %339 = vector.load %arg12[%c0_66, %c0_67] : memref<2x4xf32, #tpu.memory_space<vmem>>, vector<2x4xf32>
    tpu.vector_store %arg12[%c0_66, %c0_67], %338 {strides = array<i32>} : memref<2x4xf32, #tpu.memory_space<vmem>>, vector<2x4xf32>,
    return
  }
}

</mosaic_0001>

<llo_original>
// kernel: tpu_custom_call.1
$region0: #{tpu_custom_call.1}
  #allocation0 [shape = 'u32[]', space=smem, size = 0x4, offset = 0x4, fixed_abs, tag = 'smem constant byte address 0x4 - core index']
  #allocation1 [shape = 'u32[144,128]{1,0:T(1,128)}', space=vmem, size = 0x12000, scoped, tag = 'internal scratch']
  %s0 = inlined_call_operand.hbm [shape: f32[8,2,8], index: 0, kind: input, shape index: {}]
  %s1 = inlined_call_operand.hbm [shape: f32[2,2,32], index: 1, kind: input, shape index: {}]
  %s2 = inlined_call_operand.hbm [shape: f32[2,2,32], index: 2, kind: input, shape index: {}]
  %s3 = inlined_call_operand.vmem [shape: f32[8,128], index: 3, kind: input, shape index: {}]
  %s4 = inlined_call_operand.vmem [shape: f32[32,128], index: 4, kind: input, shape index: {}]
  %s5 = inlined_call_operand.vmem [shape: f32[1,128], index: 5, kind: input, shape index: {}]
  %s6 = inlined_call_operand.hbm [shape: f32[64,128], index: 6, kind: input, shape index: {}]
  %s7 = inlined_call_operand.vmem [shape: f32[1,128], index: 7, kind: input, shape index: {}]
  %s8 = inlined_call_operand.hbm [shape: f32[32,32], index: 8, kind: input, shape index: {}]
  %s9 = inlined_call_operand.vmem [shape: f32[1,32], index: 9, kind: input, shape index: {}]
  %s10 = inlined_call_operand.vmem [shape: f32[32,4], index: 10, kind: input, shape index: {}]
  %s11 = inlined_call_operand.vmem [shape: f32[1,4], index: 11, kind: input, shape index: {}]
  %s12 = inlined_call_operand.hbm [shape: f32[2,4], index: 12, kind: output, shape index: {}]
  %s13 = sld [smem:[#allocation0]]
  $region78: #{tpu_custom_call.1} parent=0
    _
  %s15 = ssub.s32 1, %s13
  %s16 = scalar_select 0, %s15, %s13
  $region1: #{tpu_custom_call.1} parent=0
    #allocation2 [shape = 'u8[8192]{0}', space=vmem, size = 0x2000, scoped, tag = 'input window, operand 0, single buffered']
    #allocation3 [shape = 's32[1]{0}', space=sflag, size = 0x4, scoped, tag = 'scoped memory for tpu_custom_call.1']
    #allocation4 [shape = 's32[1]{0}', space=sflag, size = 0x4, scoped, tag = 'scoped memory for tpu_custom_call.1']
    #allocation5 [shape = 'u8[2048]{0}', space=vmem, size = 0x800, scoped, tag = 'input window, operand 1, single buffered']
    #allocation6 [shape = 's32[1]{0}', space=sflag, size = 0x4, scoped, tag = 'scoped memory for tpu_custom_call.1']
    #allocation7 [shape = 'u8[2048]{0}', space=vmem, size = 0x800, scoped, tag = 'input window, operand 2, single buffered']
    #allocation8 [shape = 'u8[32768]{0}', space=vmem, size = 0x8000, scoped, tag = 'input window, operand 6, single buffered']
    #allocation9 [shape = 's32[1]{0}', space=sflag, size = 0x4, scoped, tag = 'scoped memory for tpu_custom_call.1']
    #allocation10 [shape = 'u8[16384]{0}', space=vmem, size = 0x4000, scoped, tag = 'input window, operand 8, single buffered']
    #allocation11 [shape = 'u8[1024]{0}', space=vmem, size = 0x400, scoped, tag = 'output window, operand 0, single buffered']
    %17 = vsyncpa [#allocation3], 0
    %18 = vsyncpa [#allocation6], 0
    %19 = vsyncpa [#allocation9], 0
    %20 = vsyncpa [#allocation4], 0
    // Predicated region
    $region2: #{tpu_custom_call.1} parent=1 // pred_check
      _
    $region3: #{tpu_custom_call.1} parent=1 // pred_check_branch
      %22 = sbr.rel (0) target = $region5
    $region4: #{tpu_custom_call.1} parent=1 // pred_region
      %s24 = ssub.s32 256, 256
      %25 = vsyncadd [#allocation3], %s24
      %s26 = sshll.u32 [#allocation2], 4
      %s27 = int_to_ptr.vmem [resolvable:$true] %s26
      %32 = dma.hbm_to_vmem [thread:$0]  %s0, 256, %s27, [#allocation3], 32, 32, 2
    $region5: #{tpu_custom_call.1} parent=1 // pred_fallthru
      _
    // Predicated region
    $region6: #{tpu_custom_call.1} parent=1 // pred_check
      _
    $region7: #{tpu_custom_call.1} parent=1 // pred_check_branch
      %34 = sbr.rel (0) target = $region9
    $region8: #{tpu_custom_call.1} parent=1 // pred_region
      %s36 = ssub.s32 64, 64
      %37 = vsyncadd [#allocation6], %s36
      %s38 = sshll.u32 [#allocation5], 4
      %s39 = int_to_ptr.vmem [resolvable:$true] %s38
      %44 = dma.hbm_to_vmem [thread:$0]  %s1, 64, %s39, [#allocation6], 32, 32, 2
    $region9: #{tpu_custom_call.1} parent=1 // pred_fallthru
      _
    // Predicated region
    $region10: #{tpu_custom_call.1} parent=1 // pred_check
      _
    $region11: #{tpu_custom_call.1} parent=1 // pred_check_branch
      %46 = sbr.rel (0) target = $region13
    $region12: #{tpu_custom_call.1} parent=1 // pred_region
      %s48 = ssub.s32 64, 64
      %49 = vsyncadd [#allocation6], %s48
      %s50 = sshll.u32 [#allocation7], 4
      %s51 = int_to_ptr.vmem [resolvable:$true] %s50
      %56 = dma.hbm_to_vmem [thread:$0]  %s2, 64, %s51, [#allocation6], 32, 32, 2
    $region13: #{tpu_custom_call.1} parent=1 // pred_fallthru
      _
    // Predicated region
    $region14: #{tpu_custom_call.1} parent=1 // pred_check
      _
    $region15: #{tpu_custom_call.1} parent=1 // pred_check_branch
      %58 = sbr.rel (0) target = $region17
    $region16: #{tpu_custom_call.1} parent=1 // pred_region
      _
    $region17: #{tpu_custom_call.1} parent=1 // pred_fallthru
      _
    // Predicated region
    $region18: #{tpu_custom_call.1} parent=1 // pred_check
      _
    $region19: #{tpu_custom_call.1} parent=1 // pred_check_branch
      %60 = sbr.rel (0) target = $region21
    $region20: #{tpu_custom_call.1} parent=1 // pred_region
      _
    $region21: #{tpu_custom_call.1} parent=1 // pred_fallthru
      _
    // Predicated region
    $region22: #{tpu_custom_call.1} parent=1 // pred_check
      _
    $region23: #{tpu_custom_call.1} parent=1 // pred_check_branch
      %62 = sbr.rel (0) target = $region25
    $region24: #{tpu_custom_call.1} parent=1 // pred_region
      _
    $region25: #{tpu_custom_call.1} parent=1 // pred_fallthru
      _
    // Predicated region
    $region26: #{tpu_custom_call.1} parent=1 // pred_check
      _
    $region27: #{tpu_custom_call.1} parent=1 // pred_check_branch
      %64 = sbr.rel (0) target = $region29
    $region28: #{tpu_custom_call.1} parent=1 // pred_region
      %s66 = ssub.s32 1024, 1024
      %67 = vsyncadd [#allocation9], %s66
      %s68 = sshll.u32 [#allocation8], 4
      %s69 = int_to_ptr.vmem [resolvable:$true] %s68
      %74 = dma.hbm_to_vmem [thread:$0]  %s6, 1024, %s69, [#allocation9], 128, 128, 8
    $region29: #{tpu_custom_call.1} parent=1 // pred_fallthru
      _
    // Predicated region
    $region30: #{tpu_custom_call.1} parent=1 // pred_check
      _
    $region31: #{tpu_custom_call.1} parent=1 // pred_check_branch
      %76 = sbr.rel (0) target = $region33
    $region32: #{tpu_custom_call.1} parent=1 // pred_region
      _
    $region33: #{tpu_custom_call.1} parent=1 // pred_fallthru
      _
    // Predicated region
    $region34: #{tpu_custom_call.1} parent=1 // pred_check
      _
    $region35: #{tpu_custom_call.1} parent=1 // pred_check_branch
      %78 = sbr.rel (0) target = $region37
    $region36: #{tpu_custom_call.1} parent=1 // pred_region
      %s80 = ssub.s32 512, 512
      %81 = vsyncadd [#allocation9], %s80
      %s82 = sshll.u32 [#allocation10], 4
      %s83 = int_to_ptr.vmem [resolvable:$true] %s82
      %88 = dma.hbm_to_vmem [thread:$0]  %s8, 512, %s83, [#allocation9], 128, 128, 8
    $region37: #{tpu_custom_call.1} parent=1 // pred_fallthru
      _
    // Predicated region
    $region38: #{tpu_custom_call.1} parent=1 // pred_check
      _
    $region39: #{tpu_custom_call.1} parent=1 // pred_check_branch
      %90 = sbr.rel (0) target = $region41
    $region40: #{tpu_custom_call.1} parent=1 // pred_region
      _
    $region41: #{tpu_custom_call.1} parent=1 // pred_fallthru
      _
    // Predicated region
    $region42: #{tpu_custom_call.1} parent=1 // pred_check
      _
    $region43: #{tpu_custom_call.1} parent=1 // pred_check_branch
      %92 = sbr.rel (0) target = $region45
    $region44: #{tpu_custom_call.1} parent=1 // pred_region
      _
    $region45: #{tpu_custom_call.1} parent=1 // pred_fallthru
      _
    // Predicated region
    $region46: #{tpu_custom_call.1} parent=1 // pred_check
      _
    $region47: #{tpu_custom_call.1} parent=1 // pred_check_branch
      %94 = sbr.rel (0) target = $region49
    $region48: #{tpu_custom_call.1} parent=1 // pred_region
      _
    $region49: #{tpu_custom_call.1} parent=1 // pred_fallthru
      _
    // Predicated region
    $region50: #{tpu_custom_call.1} parent=1 // pred_check
      _
    $region51: #{tpu_custom_call.1} parent=1 // pred_check_branch
      %96 = sbr.rel (0) target = $region53
    $region52: #{tpu_custom_call.1} parent=1 // pred_region
      %97 = dma.done [#allocation3], 256
    $region53: #{tpu_custom_call.1} parent=1 // pred_fallthru
      _
    // Predicated region
    $region54: #{tpu_custom_call.1} parent=1 // pred_check
      _
    $region55: #{tpu_custom_call.1} parent=1 // pred_check_branch
      %99 = sbr.rel (0) target = $region57
    $region56: #{tpu_custom_call.1} parent=1 // pred_region
      %100 = dma.done [#allocation6], 64
    $region57: #{tpu_custom_call.1} parent=1 // pred_fallthru
      _
    // Predicated region
    $region58: #{tpu_custom_call.1} parent=1 // pred_check
      _
    $region59: #{tpu_custom_call.1} parent=1 // pred_check_branch
      %102 = sbr.rel (0) target = $region61
    $region60: #{tpu_custom_call.1} parent=1 // pred_region
      %103 = dma.done [#allocation6], 64
    $region61: #{tpu_custom_call.1} parent=1 // pred_fallthru
      _
    // Predicated region
    $region62: #{tpu_custom_call.1} parent=1 // pred_check
      _
    $region63: #{tpu_custom_call.1} parent=1 // pred_check_branch
      %105 = sbr.rel (0) target = $region65
    $region64: #{tpu_custom_call.1} parent=1 // pred_region
      %106 = dma.done [#allocation9], 1024
    $region65: #{tpu_custom_call.1} parent=1 // pred_fallthru
      _
    // Predicated region
    $region66: #{tpu_custom_call.1} parent=1 // pred_check
      _
    $region67: #{tpu_custom_call.1} parent=1 // pred_check_branch
      %108 = sbr.rel (0) target = $region69
    $region68: #{tpu_custom_call.1} parent=1 // pred_region
      %109 = dma.done [#allocation9], 512
    $region69: #{tpu_custom_call.1} parent=1 // pred_fallthru
      _
    %v110 = vld [vmem:[#allocation2] sm:$0x3]
    %v111 = vld [vmem:[#allocation2 + $0x2] sm:$0x3]
    %v112 = vld [vmem:[#allocation2 + $0x4] sm:$0x3]
    %v113 = vld [vmem:[#allocation2 + $0x6] sm:$0x3]
    %v114 = vld [vmem:[#allocation2 + $0x8] sm:$0x3]
    %v115 = vld [vmem:[#allocation2 + $0xa] sm:$0x3]
    %v116 = vld [vmem:[#allocation2 + $0xc] sm:$0x3]
    %v117 = vld [vmem:[#allocation2 + $0xe] sm:$0x3]
    %v118 = vld [vmem:[%s3] sm:$0xff]
    %v119 = vld [vmem:[%s5] sm:$0x1]
    %v121 = vlaneseq
    %v122 = vshrl.u32 %v121, 7
    %v123 = vsub.s32 0, %v122
    %v124 = vrot.slane %v119, %v123
    %v134 = vcombine.low %v110, %v111
    %v135 = vcombine.low %v112, %v113
    %v137 = vunpack.c.l.s4 1983009808
    %v138 = vunpack.c.0.s8 %v137
    %v139 = vlaneseq
    %v140 = vshrl.u32 %v139, 7
    %v141 = vsub.s32 %v138, %v140
    %v142 = vrot.slane %v134, %v141
    %v144 = vunpack.c.l.s4 1983009808
    %v145 = vunpack.c.0.s8 %v144
    %v146 = vlaneseq
    %v147 = vshrl.u32 %v146, 7
    %v148 = vsub.s32 %v145, %v147
    %v149 = vrot.slane %v135, %v148
    %v150 = vcombine.low %v142, %v149
    %v151 = vcombine.low %v114, %v115
    %v152 = vcombine.low %v116, %v117
    %v154 = vunpack.c.l.s4 1983009808
    %v155 = vunpack.c.0.s8 %v154
    %v156 = vlaneseq
    %v157 = vshrl.u32 %v156, 7
    %v158 = vsub.s32 %v155, %v157
    %v159 = vrot.slane %v151, %v158
    %v161 = vunpack.c.l.s4 1983009808
    %v162 = vunpack.c.0.s8 %v161
    %v163 = vlaneseq
    %v164 = vshrl.u32 %v163, 7
    %v165 = vsub.s32 %v162, %v164
    %v166 = vrot.slane %v152, %v165
    %v167 = vcombine.low %v159, %v166
    %vm168 = vcmask 64512
    %v169 = vsel %vm168, %v150, 0
    %v171 = vsel %vm168, %v167, 0
    %173 = vmatprep.subr.mxu0 0.0
    %174 = vmatpush1.msra.mxu0 0.0
    %175 = vmatprep.subr.mxu0 0.0
    %176 = vmatpush1.msra.mxu0 0.0
    %177 = vmatprep.subr.mxu0 0.0
    %178 = vmatpush1.msra.mxu0 0.0
    %179 = vmatprep.subr.mxu0 0.0
    %180 = vmatpush1.msra.mxu0 0.0
    %181 = vmatprep.subr.mxu0 0.0
    %182 = vmatpush1.msra.mxu0 0.0
    %183 = vmatprep.subr.mxu0 0.0
    %184 = vmatpush1.msra.mxu0 0.0
    %185 = vmatprep.subr.mxu0 0.0
    %186 = vmatpush1.msra.mxu0 0.0
    %187 = vmatprep.subr.mxu0 0.0
    %188 = vmatpush1.msra.mxu0 0.0
    %189 = vmatprep.subr.mxu0 0.0
    %190 = vmatpush1.msra.mxu0 0.0
    %191 = vmatprep.subr.mxu0 0.0
    %192 = vmatpush1.msra.mxu0 0.0
    %193 = vmatprep.subr.mxu0 0.0
    %194 = vmatpush1.msra.mxu0 0.0
    %195 = vmatprep.subr.mxu0 0.0
    %196 = vmatpush1.msra.mxu0 0.0
    %197 = vmatprep.subr.mxu0 0.0
    %198 = vmatpush1.msra.mxu0 0.0
    %199 = vmatprep.subr.mxu0 0.0
    %200 = vmatpush1.msra.mxu0 0.0
    %201 = vmatprep.subr.mxu0 0.0
    %202 = vmatpush1.msra.mxu0 0.0
    %203 = vmatprep.subr.mxu0 0.0
    %204 = vmatpush1.msra.mxu0 %v118
    %205 = vmatprep.subr.mxu0 0.0
    %206 = vmatpush2.msra.mxu0 0.0
    %207 = vmatprep.subr.mxu0 0.0
    %208 = vmatpush2.msra.mxu0 0.0
    %209 = vmatprep.subr.mxu0 0.0
    %210 = vmatpush2.msra.mxu0 0.0
    %211 = vmatprep.subr.mxu0 0.0
    %212 = vmatpush2.msra.mxu0 0.0
    %213 = vmatprep.subr.mxu0 0.0
    %214 = vmatpush2.msra.mxu0 0.0
    %215 = vmatprep.subr.mxu0 0.0
    %216 = vmatpush2.msra.mxu0 0.0
    %217 = vmatprep.subr.mxu0 0.0
    %218 = vmatpush2.msra.mxu0 0.0
    %219 = vmatprep.subr.mxu0 0.0
    %220 = vmatpush2.msra.mxu0 0.0
    %221 = vmatprep.subr.mxu0 0.0
    %222 = vmatpush2.msra.mxu0 0.0
    %223 = vmatprep.subr.mxu0 0.0
    %224 = vmatpush2.msra.mxu0 0.0
    %225 = vmatprep.subr.mxu0 0.0
    %226 = vmatpush2.msra.mxu0 0.0
    %227 = vmatprep.subr.mxu0 0.0
    %228 = vmatpush2.msra.mxu0 0.0
    %229 = vmatprep.subr.mxu0 0.0
    %230 = vmatpush2.msra.mxu0 0.0
    %231 = vmatprep.subr.mxu0 0.0
    %232 = vmatpush2.msra.mxu0 0.0
    %233 = vmatprep.subr.mxu0 0.0
    %234 = vmatpush2.msra.mxu0 0.0
    %235 = vmatprep.subr.mxu0 0.0
    %236 = vmatpush2.msra.mxu0 0.0
    %237 = vmatprep.mubr.f32.mxu0 0.0
    %238 = vmatmul.mubr.f32.gmra.mxu0 %v169
    %v239 = vpop.f32.mrf.mxu0
    %v240 = vadd.f32 %v124, %v239
    %v241 = vpop.f32.mrf.mxu0
    %242 = vmatprep.mubr.f32.mxu0 0.0
    %243 = vmatmul.mubr.f32.gmra.mxu0 %v171
    %v244 = vpop.f32.mrf.mxu0
    %v245 = vadd.f32 %v124, %v244
    %v246 = vpop.f32.mrf.mxu0
    %247 = vdwg.mxu0
    %v248 = vld [vmem:[%s4] sm:$0xff]
    %v249 = vld [vmem:[%s4 + $0x8] sm:$0xff]
    %v250 = vld [vmem:[%s4 + $0x10] sm:$0xff]
    %v251 = vld [vmem:[%s4 + $0x18] sm:$0xff]
    %v252 = vld [vmem:[#allocation5] sm:$0x3]
    %v253 = vld [vmem:[#allocation7] sm:$0x3]
    %vm254 = vcmask 261120
    %v256 = vsel %vm254, %v252, 0
    %258 = vmatprep.subr.mxu0 0.0
    %259 = vmatpush1.msra.mxu0 0.0
    %260 = vmatprep.subr.mxu0 0.0
    %261 = vmatpush1.msra.mxu0 0.0
    %262 = vmatprep.subr.mxu0 0.0
    %263 = vmatpush1.msra.mxu0 0.0
    %264 = vmatprep.subr.mxu0 0.0
    %265 = vmatpush1.msra.mxu0 0.0
    %266 = vmatprep.subr.mxu0 0.0
    %267 = vmatpush1.msra.mxu0 0.0
    %268 = vmatprep.subr.mxu0 0.0
    %269 = vmatpush1.msra.mxu0 0.0
    %270 = vmatprep.subr.mxu0 0.0
    %271 = vmatpush1.msra.mxu0 0.0
    %272 = vmatprep.subr.mxu0 0.0
    %273 = vmatpush1.msra.mxu0 0.0
    %274 = vmatprep.subr.mxu0 0.0
    %275 = vmatpush1.msra.mxu0 0.0
    %276 = vmatprep.subr.mxu0 0.0
    %277 = vmatpush1.msra.mxu0 0.0
    %278 = vmatprep.subr.mxu0 0.0
    %279 = vmatpush1.msra.mxu0 0.0
    %280 = vmatprep.subr.mxu0 0.0
    %281 = vmatpush1.msra.mxu0 0.0
    %282 = vmatprep.subr.mxu0 0.0
    %283 = vmatpush1.msra.mxu0 %v251
    %284 = vmatprep.subr.mxu0 0.0
    %285 = vmatpush1.msra.mxu0 %v250
    %286 = vmatprep.subr.mxu0 0.0
    %287 = vmatpush1.msra.mxu0 %v249
    %288 = vmatprep.subr.mxu0 0.0
    %289 = vmatpush1.msra.mxu0 %v248
    %290 = vmatprep.subr.mxu0 0.0
    %291 = vmatpush2.msra.mxu0 0.0
    %292 = vmatprep.subr.mxu0 0.0
    %293 = vmatpush2.msra.mxu0 0.0
    %294 = vmatprep.subr.mxu0 0.0
    %295 = vmatpush2.msra.mxu0 0.0
    %296 = vmatprep.subr.mxu0 0.0
    %297 = vmatpush2.msra.mxu0 0.0
    %298 = vmatprep.subr.mxu0 0.0
    %299 = vmatpush2.msra.mxu0 0.0
    %300 = vmatprep.subr.mxu0 0.0
    %301 = vmatpush2.msra.mxu0 0.0
    %302 = vmatprep.subr.mxu0 0.0
    %303 = vmatpush2.msra.mxu0 0.0
    %304 = vmatprep.subr.mxu0 0.0
    %305 = vmatpush2.msra.mxu0 0.0
    %306 = vmatprep.subr.mxu0 0.0
    %307 = vmatpush2.msra.mxu0 0.0
    %308 = vmatprep.subr.mxu0 0.0
    %309 = vmatpush2.msra.mxu0 0.0
    %310 = vmatprep.subr.mxu0 0.0
    %311 = vmatpush2.msra.mxu0 0.0
    %312 = vmatprep.subr.mxu0 0.0
    %313 = vmatpush2.msra.mxu0 0.0
    %314 = vmatprep.subr.mxu0 0.0
    %315 = vmatpush2.msra.mxu0 0.0
    %316 = vmatprep.subr.mxu0 0.0
    %317 = vmatpush2.msra.mxu0 0.0
    %318 = vmatprep.subr.mxu0 0.0
    %319 = vmatpush2.msra.mxu0 0.0
    %320 = vmatprep.subr.mxu0 0.0
    %321 = vmatpush2.msra.mxu0 0.0
    %322 = vmatprep.mubr.f32.mxu0 0.0
    %323 = vmatmul.mubr.f32.gmra.mxu0 %v256
    %v324 = vpop.f32.mrf.mxu0
    %v325 = vadd.f32 0.0, %v324
    %v326 = vpop.f32.mrf.mxu0
    %327 = vdwg.mxu0
    %v328 = vadd.f32 %v240, %v325
    %v329 = vxor.u32 %v328, 2147483648
    %v330 = vmul.f32 %v329, 1.442695
    %v331 = vpow.pop %v330
    %v332 = vadd.f32 %v331, 1.0
    %v333 = vrcp.pop %v332
    %v334 = vmul.f32 1.0, %v333
    %v335 = vtanh.pop %v328
    %337 = vrot.lane.b32.xlu0 %v253, 32
    %v338 = vpop.permute.xlu0 %337
    %v340 = vmul.f32 %v334, %v338
    %342 = vrot.lane.b32.xlu0 %v335, 32
    %v343 = vpop.permute.xlu0 %342
    %v345 = vmul.f32 %v334, %v343
    %347 = vrot.lane.b32.xlu0 %v345, 32
    %v348 = vpop.permute.xlu0 %347
    %v350 = vadd.f32 %v340, %v348
    %v351 = vtanh.pop %v350
    %353 = vrot.lane.b32.xlu0 %v351, 32
    %v354 = vpop.permute.xlu0 %353
    %v356 = vmul.f32 %v334, %v354
    %358 = vrot.lane.b32.xlu0 %v356, 64
    %v359 = vpop.permute.xlu0 %358
    %v360 = vsel %vm254, %v359, 0
    %362 = vmatprep.subr.mxu0 0.0
    %363 = vmatpush1.msra.mxu0 0.0
    %364 = vmatprep.subr.mxu0 0.0
    %365 = vmatpush1.msra.mxu0 0.0
    %366 = vmatprep.subr.mxu0 0.0
    %367 = vmatpush1.msra.mxu0 0.0
    %368 = vmatprep.subr.mxu0 0.0
    %369 = vmatpush1.msra.mxu0 0.0
    %370 = vmatprep.subr.mxu0 0.0
    %371 = vmatpush1.msra.mxu0 0.0
    %372 = vmatprep.subr.mxu0 0.0
    %373 = vmatpush1.msra.mxu0 0.0
    %374 = vmatprep.subr.mxu0 0.0
    %375 = vmatpush1.msra.mxu0 0.0
    %376 = vmatprep.subr.mxu0 0.0
    %377 = vmatpush1.msra.mxu0 0.0
    %378 = vmatprep.subr.mxu0 0.0
    %379 = vmatpush1.msra.mxu0 0.0
    %380 = vmatprep.subr.mxu0 0.0
    %381 = vmatpush1.msra.mxu0 0.0
    %382 = vmatprep.subr.mxu0 0.0
    %383 = vmatpush1.msra.mxu0 0.0
    %384 = vmatprep.subr.mxu0 0.0
    %385 = vmatpush1.msra.mxu0 0.0
    %386 = vmatprep.subr.mxu0 0.0
    %387 = vmatpush1.msra.mxu0 %v251
    %388 = vmatprep.subr.mxu0 0.0
    %389 = vmatpush1.msra.mxu0 %v250
    %390 = vmatprep.subr.mxu0 0.0
    %391 = vmatpush1.msra.mxu0 %v249
    %392 = vmatprep.subr.mxu0 0.0
    %393 = vmatpush1.msra.mxu0 %v248
    %394 = vmatprep.subr.mxu0 0.0
    %395 = vmatpush2.msra.mxu0 0.0
    %396 = vmatprep.subr.mxu0 0.0
    %397 = vmatpush2.msra.mxu0 0.0
    %398 = vmatprep.subr.mxu0 0.0
    %399 = vmatpush2.msra.mxu0 0.0
    %400 = vmatprep.subr.mxu0 0.0
    %401 = vmatpush2.msra.mxu0 0.0
    %402 = vmatprep.subr.mxu0 0.0
    %403 = vmatpush2.msra.mxu0 0.0
    %404 = vmatprep.subr.mxu0 0.0
    %405 = vmatpush2.msra.mxu0 0.0
    %406 = vmatprep.subr.mxu0 0.0
    %407 = vmatpush2.msra.mxu0 0.0
    %408 = vmatprep.subr.mxu0 0.0
    %409 = vmatpush2.msra.mxu0 0.0
    %410 = vmatprep.subr.mxu0 0.0
    %411 = vmatpush2.msra.mxu0 0.0
    %412 = vmatprep.subr.mxu0 0.0
    %413 = vmatpush2.msra.mxu0 0.0
    %414 = vmatprep.subr.mxu0 0.0
    %415 = vmatpush2.msra.mxu0 0.0
    %416 = vmatprep.subr.mxu0 0.0
    %417 = vmatpush2.msra.mxu0 0.0
    %418 = vmatprep.subr.mxu0 0.0
    %419 = vmatpush2.msra.mxu0 0.0
    %420 = vmatprep.subr.mxu0 0.0
    %421 = vmatpush2.msra.mxu0 0.0
    %422 = vmatprep.subr.mxu0 0.0
    %423 = vmatpush2.msra.mxu0 0.0
    %424 = vmatprep.subr.mxu0 0.0
    %425 = vmatpush2.msra.mxu0 0.0
    %426 = vmatprep.mubr.f32.mxu0 0.0
    %427 = vmatmul.mubr.f32.gmra.mxu0 %v360
    %v428 = vpop.f32.mrf.mxu0
    %v429 = vadd.f32 0.0, %v428
    %v430 = vpop.f32.mrf.mxu0
    %431 = vdwg.mxu0
    %v433 = vrot.slane %v429, 6
    %v435 = vadd.f32 %v240, %v433
    %v436 = vxor.u32 %v435, 2147483648
    %v437 = vmul.f32 %v436, 1.442695
    %v438 = vpow.pop %v437
    %v439 = vadd.f32 %v438, 1.0
    %v440 = vrcp.pop %v439
    %v441 = vmul.f32 1.0, %v440
    %v442 = vtanh.pop %v435
    %v444 = vrot.slane %v350, 6
    %v446 = vmul.f32 %v441, %v444
    %448 = vrot.lane.b32.xlu0 %v442, 32
    %v449 = vpop.permute.xlu0 %448
    %v451 = vmul.f32 %v441, %v449
    %453 = vrot.lane.b32.xlu0 %v451, 32
    %v454 = vpop.permute.xlu0 %453
    %v456 = vadd.f32 %v446, %v454
    %v457 = vtanh.pop %v456
    %459 = vrot.lane.b32.xlu0 %v457, 32
    %v460 = vpop.permute.xlu0 %459
    %v462 = vmul.f32 %v441, %v460
    %v464 = vrot.slane %v462, 2
    %465 = vrot.lane.b32.xlu0 %v464, 64
    %v466 = vpop.permute.xlu0 %465
    %v467 = vsel %vm254, %v466, 0
    %469 = vmatprep.subr.mxu0 0.0
    %470 = vmatpush1.msra.mxu0 0.0
    %471 = vmatprep.subr.mxu0 0.0
    %472 = vmatpush1.msra.mxu0 0.0
    %473 = vmatprep.subr.mxu0 0.0
    %474 = vmatpush1.msra.mxu0 0.0
    %475 = vmatprep.subr.mxu0 0.0
    %476 = vmatpush1.msra.mxu0 0.0
    %477 = vmatprep.subr.mxu0 0.0
    %478 = vmatpush1.msra.mxu0 0.0
    %479 = vmatprep.subr.mxu0 0.0
    %480 = vmatpush1.msra.mxu0 0.0
    %481 = vmatprep.subr.mxu0 0.0
    %482 = vmatpush1.msra.mxu0 0.0
    %483 = vmatprep.subr.mxu0 0.0
    %484 = vmatpush1.msra.mxu0 0.0
    %485 = vmatprep.subr.mxu0 0.0
    %486 = vmatpush1.msra.mxu0 0.0
    %487 = vmatprep.subr.mxu0 0.0
    %488 = vmatpush1.msra.mxu0 0.0
    %489 = vmatprep.subr.mxu0 0.0
    %490 = vmatpush1.msra.mxu0 0.0
    %491 = vmatprep.subr.mxu0 0.0
    %492 = vmatpush1.msra.mxu0 0.0
    %493 = vmatprep.subr.mxu0 0.0
    %494 = vmatpush1.msra.mxu0 %v251
    %495 = vmatprep.subr.mxu0 0.0
    %496 = vmatpush1.msra.mxu0 %v250
    %497 = vmatprep.subr.mxu0 0.0
    %498 = vmatpush1.msra.mxu0 %v249
    %499 = vmatprep.subr.mxu0 0.0
    %500 = vmatpush1.msra.mxu0 %v248
    %501 = vmatprep.subr.mxu0 0.0
    %502 = vmatpush2.msra.mxu0 0.0
    %503 = vmatprep.subr.mxu0 0.0
    %504 = vmatpush2.msra.mxu0 0.0
    %505 = vmatprep.subr.mxu0 0.0
    %506 = vmatpush2.msra.mxu0 0.0
    %507 = vmatprep.subr.mxu0 0.0
    %508 = vmatpush2.msra.mxu0 0.0
    %509 = vmatprep.subr.mxu0 0.0
    %510 = vmatpush2.msra.mxu0 0.0
    %511 = vmatprep.subr.mxu0 0.0
    %512 = vmatpush2.msra.mxu0 0.0
    %513 = vmatprep.subr.mxu0 0.0
    %514 = vmatpush2.msra.mxu0 0.0
    %515 = vmatprep.subr.mxu0 0.0
    %516 = vmatpush2.msra.mxu0 0.0
    %517 = vmatprep.subr.mxu0 0.0
    %518 = vmatpush2.msra.mxu0 0.0
    %519 = vmatprep.subr.mxu0 0.0
    %520 = vmatpush2.msra.mxu0 0.0
    %521 = vmatprep.subr.mxu0 0.0
    %522 = vmatpush2.msra.mxu0 0.0
    %523 = vmatprep.subr.mxu0 0.0
    %524 = vmatpush2.msra.mxu0 0.0
    %525 = vmatprep.subr.mxu0 0.0
    %526 = vmatpush2.msra.mxu0 0.0
    %527 = vmatprep.subr.mxu0 0.0
    %528 = vmatpush2.msra.mxu0 0.0
    %529 = vmatprep.subr.mxu0 0.0
    %530 = vmatpush2.msra.mxu0 0.0
    %531 = vmatprep.subr.mxu0 0.0
    %532 = vmatpush2.msra.mxu0 0.0
    %533 = vmatprep.mubr.f32.mxu0 0.0
    %534 = vmatmul.mubr.f32.gmra.mxu0 %v467
    %v535 = vpop.f32.mrf.mxu0
    %v536 = vadd.f32 0.0, %v535
    %v537 = vpop.f32.mrf.mxu0
    %538 = vdwg.mxu0
    %v540 = vrot.slane %v536, 4
    %v542 = vadd.f32 %v240, %v540
    %v543 = vxor.u32 %v542, 2147483648
    %v544 = vmul.f32 %v543, 1.442695
    %v545 = vpow.pop %v544
    %v546 = vadd.f32 %v545, 1.0
    %v547 = vrcp.pop %v546
    %v548 = vmul.f32 1.0, %v547
    %v549 = vtanh.pop %v542
    %v551 = vrot.slane %v456, 6
    %v553 = vmul.f32 %v548, %v551
    %555 = vrot.lane.b32.xlu0 %v549, 32
    %v556 = vpop.permute.xlu0 %555
    %v558 = vmul.f32 %v548, %v556
    %560 = vrot.lane.b32.xlu0 %v558, 32
    %v561 = vpop.permute.xlu0 %560
    %v563 = vadd.f32 %v553, %v561
    %v564 = vtanh.pop %v563
    %566 = vrot.lane.b32.xlu0 %v564, 32
    %v567 = vpop.permute.xlu0 %566
    %v569 = vmul.f32 %v548, %v567
    %v571 = vrot.slane %v569, 4
    %572 = vrot.lane.b32.xlu0 %v571, 64
    %v573 = vpop.permute.xlu0 %572
    %v574 = vsel %vm254, %v573, 0
    %576 = vmatprep.subr.mxu0 0.0
    %577 = vmatpush1.msra.mxu0 0.0
    %578 = vmatprep.subr.mxu0 0.0
    %579 = vmatpush1.msra.mxu0 0.0
    %580 = vmatprep.subr.mxu0 0.0
    %581 = vmatpush1.msra.mxu0 0.0
    %582 = vmatprep.subr.mxu0 0.0
    %583 = vmatpush1.msra.mxu0 0.0
    %584 = vmatprep.subr.mxu0 0.0
    %585 = vmatpush1.msra.mxu0 0.0
    %586 = vmatprep.subr.mxu0 0.0
    %587 = vmatpush1.msra.mxu0 0.0
    %588 = vmatprep.subr.mxu0 0.0
    %589 = vmatpush1.msra.mxu0 0.0
    %590 = vmatprep.subr.mxu0 0.0
    %591 = vmatpush1.msra.mxu0 0.0
    %592 = vmatprep.subr.mxu0 0.0
    %593 = vmatpush1.msra.mxu0 0.0
    %594 = vmatprep.subr.mxu0 0.0
    %595 = vmatpush1.msra.mxu0 0.0
    %596 = vmatprep.subr.mxu0 0.0
    %597 = vmatpush1.msra.mxu0 0.0
    %598 = vmatprep.subr.mxu0 0.0
    %599 = vmatpush1.msra.mxu0 0.0
    %600 = vmatprep.subr.mxu0 0.0
    %601 = vmatpush1.msra.mxu0 %v251
    %602 = vmatprep.subr.mxu0 0.0
    %603 = vmatpush1.msra.mxu0 %v250
    %604 = vmatprep.subr.mxu0 0.0
    %605 = vmatpush1.msra.mxu0 %v249
    %606 = vmatprep.subr.mxu0 0.0
    %607 = vmatpush1.msra.mxu0 %v248
    %608 = vmatprep.subr.mxu0 0.0
    %609 = vmatpush2.msra.mxu0 0.0
    %610 = vmatprep.subr.mxu0 0.0
    %611 = vmatpush2.msra.mxu0 0.0
    %612 = vmatprep.subr.mxu0 0.0
    %613 = vmatpush2.msra.mxu0 0.0
    %614 = vmatprep.subr.mxu0 0.0
    %615 = vmatpush2.msra.mxu0 0.0
    %616 = vmatprep.subr.mxu0 0.0
    %617 = vmatpush2.msra.mxu0 0.0
    %618 = vmatprep.subr.mxu0 0.0
    %619 = vmatpush2.msra.mxu0 0.0
    %620 = vmatprep.subr.mxu0 0.0
    %621 = vmatpush2.msra.mxu0 0.0
    %622 = vmatprep.subr.mxu0 0.0
    %623 = vmatpush2.msra.mxu0 0.0
    %624 = vmatprep.subr.mxu0 0.0
    %625 = vmatpush2.msra.mxu0 0.0
    %626 = vmatprep.subr.mxu0 0.0
    %627 = vmatpush2.msra.mxu0 0.0
    %628 = vmatprep.subr.mxu0 0.0
    %629 = vmatpush2.msra.mxu0 0.0
    %630 = vmatprep.subr.mxu0 0.0
    %631 = vmatpush2.msra.mxu0 0.0
    %632 = vmatprep.subr.mxu0 0.0
    %633 = vmatpush2.msra.mxu0 0.0
    %634 = vmatprep.subr.mxu0 0.0
    %635 = vmatpush2.msra.mxu0 0.0
    %636 = vmatprep.subr.mxu0 0.0
    %637 = vmatpush2.msra.mxu0 0.0
    %638 = vmatprep.subr.mxu0 0.0
    %639 = vmatpush2.msra.mxu0 0.0
    %640 = vmatprep.mubr.f32.mxu0 0.0
    %641 = vmatmul.mubr.f32.gmra.mxu0 %v574
    %v642 = vpop.f32.mrf.mxu0
    %v643 = vadd.f32 0.0, %v642
    %v644 = vpop.f32.mrf.mxu0
    %645 = vdwg.mxu0
    %v647 = vrot.slane %v643, 2
    %v649 = vadd.f32 %v240, %v647
    %v650 = vxor.u32 %v649, 2147483648
    %v651 = vmul.f32 %v650, 1.442695
    %v652 = vpow.pop %v651
    %v653 = vadd.f32 %v652, 1.0
    %v654 = vrcp.pop %v653
    %v655 = vmul.f32 1.0, %v654
    %v656 = vtanh.pop %v649
    %v658 = vrot.slane %v563, 6
    %v660 = vmul.f32 %v655, %v658
    %662 = vrot.lane.b32.xlu0 %v656, 32
    %v663 = vpop.permute.xlu0 %662
    %v665 = vmul.f32 %v655, %v663
    %667 = vrot.lane.b32.xlu0 %v665, 32
    %v668 = vpop.permute.xlu0 %667
    %v670 = vadd.f32 %v660, %v668
    %v671 = vtanh.pop %v670
    %673 = vrot.lane.b32.xlu0 %v671, 32
    %v674 = vpop.permute.xlu0 %673
    %v676 = vmul.f32 %v655, %v674
    %v678 = vrot.slane %v676, 6
    %679 = vrot.lane.b32.xlu0 %v678, 64
    %v680 = vpop.permute.xlu0 %679
    %v681 = vsel %vm254, %v680, 0
    %683 = vmatprep.subr.mxu0 0.0
    %684 = vmatpush1.msra.mxu0 0.0
    %685 = vmatprep.subr.mxu0 0.0
    %686 = vmatpush1.msra.mxu0 0.0
    %687 = vmatprep.subr.mxu0 0.0
    %688 = vmatpush1.msra.mxu0 0.0
    %689 = vmatprep.subr.mxu0 0.0
    %690 = vmatpush1.msra.mxu0 0.0
    %691 = vmatprep.subr.mxu0 0.0
    %692 = vmatpush1.msra.mxu0 0.0
    %693 = vmatprep.subr.mxu0 0.0
    %694 = vmatpush1.msra.mxu0 0.0
    %695 = vmatprep.subr.mxu0 0.0
    %696 = vmatpush1.msra.mxu0 0.0
    %697 = vmatprep.subr.mxu0 0.0
    %698 = vmatpush1.msra.mxu0 0.0
    %699 = vmatprep.subr.mxu0 0.0
    %700 = vmatpush1.msra.mxu0 0.0
    %701 = vmatprep.subr.mxu0 0.0
    %702 = vmatpush1.msra.mxu0 0.0
    %703 = vmatprep.subr.mxu0 0.0
    %704 = vmatpush1.msra.mxu0 0.0
    %705 = vmatprep.subr.mxu0 0.0
    %706 = vmatpush1.msra.mxu0 0.0
    %707 = vmatprep.subr.mxu0 0.0
    %708 = vmatpush1.msra.mxu0 %v251
    %709 = vmatprep.subr.mxu0 0.0
    %710 = vmatpush1.msra.mxu0 %v250
    %711 = vmatprep.subr.mxu0 0.0
    %712 = vmatpush1.msra.mxu0 %v249
    %713 = vmatprep.subr.mxu0 0.0
    %714 = vmatpush1.msra.mxu0 %v248
    %715 = vmatprep.subr.mxu0 0.0
    %716 = vmatpush2.msra.mxu0 0.0
    %717 = vmatprep.subr.mxu0 0.0
    %718 = vmatpush2.msra.mxu0 0.0
    %719 = vmatprep.subr.mxu0 0.0
    %720 = vmatpush2.msra.mxu0 0.0
    %721 = vmatprep.subr.mxu0 0.0
    %722 = vmatpush2.msra.mxu0 0.0
    %723 = vmatprep.subr.mxu0 0.0
    %724 = vmatpush2.msra.mxu0 0.0
    %725 = vmatprep.subr.mxu0 0.0
    %726 = vmatpush2.msra.mxu0 0.0
    %727 = vmatprep.subr.mxu0 0.0
    %728 = vmatpush2.msra.mxu0 0.0
    %729 = vmatprep.subr.mxu0 0.0
    %730 = vmatpush2.msra.mxu0 0.0
    %731 = vmatprep.subr.mxu0 0.0
    %732 = vmatpush2.msra.mxu0 0.0
    %733 = vmatprep.subr.mxu0 0.0
    %734 = vmatpush2.msra.mxu0 0.0
    %735 = vmatprep.subr.mxu0 0.0
    %736 = vmatpush2.msra.mxu0 0.0
    %737 = vmatprep.subr.mxu0 0.0
    %738 = vmatpush2.msra.mxu0 0.0
    %739 = vmatprep.subr.mxu0 0.0
    %740 = vmatpush2.msra.mxu0 0.0
    %741 = vmatprep.subr.mxu0 0.0
    %742 = vmatpush2.msra.mxu0 0.0
    %743 = vmatprep.subr.mxu0 0.0
    %744 = vmatpush2.msra.mxu0 0.0
    %745 = vmatprep.subr.mxu0 0.0
    %746 = vmatpush2.msra.mxu0 0.0
    %747 = vmatprep.mubr.f32.mxu0 0.0
    %748 = vmatmul.mubr.f32.gmra.mxu0 %v681
    %v749 = vpop.f32.mrf.mxu0
    %v750 = vadd.f32 0.0, %v749
    %v751 = vpop.f32.mrf.mxu0
    %752 = vdwg.mxu0
    %v753 = vadd.f32 %v245, %v750
    %v754 = vxor.u32 %v753, 2147483648
    %v755 = vmul.f32 %v754, 1.442695
    %v756 = vpow.pop %v755
    %v757 = vadd.f32 %v756, 1.0
    %v758 = vrcp.pop %v757
    %v759 = vmul.f32 1.0, %v758
    %v760 = vtanh.pop %v753
    %v762 = vrot.slane %v670, 6
    %v764 = vmul.f32 %v759, %v762
    %766 = vrot.lane.b32.xlu0 %v760, 32
    %v767 = vpop.permute.xlu0 %766
    %v769 = vmul.f32 %v759, %v767
    %771 = vrot.lane.b32.xlu0 %v769, 32
    %v772 = vpop.permute.xlu0 %771
    %v774 = vadd.f32 %v764, %v772
    %v775 = vtanh.pop %v774
    %777 = vrot.lane.b32.xlu0 %v775, 32
    %v778 = vpop.permute.xlu0 %777
    %v780 = vmul.f32 %v759, %v778
    %782 = vrot.lane.b32.xlu0 %v780, 64
    %v783 = vpop.permute.xlu0 %782
    %v784 = vsel %vm254, %v783, 0
    %786 = vmatprep.subr.mxu0 0.0
    %787 = vmatpush1.msra.mxu0 0.0
    %788 = vmatprep.subr.mxu0 0.0
    %789 = vmatpush1.msra.mxu0 0.0
    %790 = vmatprep.subr.mxu0 0.0
    %791 = vmatpush1.msra.mxu0 0.0
    %792 = vmatprep.subr.mxu0 0.0
    %793 = vmatpush1.msra.mxu0 0.0
    %794 = vmatprep.subr.mxu0 0.0
    %795 = vmatpush1.msra.mxu0 0.0
    %796 = vmatprep.subr.mxu0 0.0
    %797 = vmatpush1.msra.mxu0 0.0
    %798 = vmatprep.subr.mxu0 0.0
    %799 = vmatpush1.msra.mxu0 0.0
    %800 = vmatprep.subr.mxu0 0.0
    %801 = vmatpush1.msra.mxu0 0.0
    %802 = vmatprep.subr.mxu0 0.0
    %803 = vmatpush1.msra.mxu0 0.0
    %804 = vmatprep.subr.mxu0 0.0
    %805 = vmatpush1.msra.mxu0 0.0
    %806 = vmatprep.subr.mxu0 0.0
    %807 = vmatpush1.msra.mxu0 0.0
    %808 = vmatprep.subr.mxu0 0.0
    %809 = vmatpush1.msra.mxu0 0.0
    %810 = vmatprep.subr.mxu0 0.0
    %811 = vmatpush1.msra.mxu0 %v251
    %812 = vmatprep.subr.mxu0 0.0
    %813 = vmatpush1.msra.mxu0 %v250
    %814 = vmatprep.subr.mxu0 0.0
    %815 = vmatpush1.msra.mxu0 %v249
    %816 = vmatprep.subr.mxu0 0.0
    %817 = vmatpush1.msra.mxu0 %v248
    %818 = vmatprep.subr.mxu0 0.0
    %819 = vmatpush2.msra.mxu0 0.0
    %820 = vmatprep.subr.mxu0 0.0
    %821 = vmatpush2.msra.mxu0 0.0
    %822 = vmatprep.subr.mxu0 0.0
    %823 = vmatpush2.msra.mxu0 0.0
    %824 = vmatprep.subr.mxu0 0.0
    %825 = vmatpush2.msra.mxu0 0.0
    %826 = vmatprep.subr.mxu0 0.0
    %827 = vmatpush2.msra.mxu0 0.0
    %828 = vmatprep.subr.mxu0 0.0
    %829 = vmatpush2.msra.mxu0 0.0
    %830 = vmatprep.subr.mxu0 0.0
    %831 = vmatpush2.msra.mxu0 0.0
    %832 = vmatprep.subr.mxu0 0.0
    %833 = vmatpush2.msra.mxu0 0.0
    %834 = vmatprep.subr.mxu0 0.0
    %835 = vmatpush2.msra.mxu0 0.0
    %836 = vmatprep.subr.mxu0 0.0
    %837 = vmatpush2.msra.mxu0 0.0
    %838 = vmatprep.subr.mxu0 0.0
    %839 = vmatpush2.msra.mxu0 0.0
    %840 = vmatprep.subr.mxu0 0.0
    %841 = vmatpush2.msra.mxu0 0.0
    %842 = vmatprep.subr.mxu0 0.0
    %843 = vmatpush2.msra.mxu0 0.0
    %844 = vmatprep.subr.mxu0 0.0
    %845 = vmatpush2.msra.mxu0 0.0
    %846 = vmatprep.subr.mxu0 0.0
    %847 = vmatpush2.msra.mxu0 0.0
    %848 = vmatprep.subr.mxu0 0.0
    %849 = vmatpush2.msra.mxu0 0.0
    %850 = vmatprep.mubr.f32.mxu0 0.0
    %851 = vmatmul.mubr.f32.gmra.mxu0 %v784
    %v852 = vpop.f32.mrf.mxu0
    %v853 = vadd.f32 0.0, %v852
    %v854 = vpop.f32.mrf.mxu0
    %855 = vdwg.mxu0
    %v857 = vrot.slane %v853, 6
    %v859 = vadd.f32 %v245, %v857
    %v860 = vxor.u32 %v859, 2147483648
    %v861 = vmul.f32 %v860, 1.442695
    %v862 = vpow.pop %v861
    %v863 = vadd.f32 %v862, 1.0
    %v864 = vrcp.pop %v863
    %v865 = vmul.f32 1.0, %v864
    %v866 = vtanh.pop %v859
    %v868 = vrot.slane %v774, 6
    %v870 = vmul.f32 %v865, %v868
    %872 = vrot.lane.b32.xlu0 %v866, 32
    %v873 = vpop.permute.xlu0 %872
    %v875 = vmul.f32 %v865, %v873
    %877 = vrot.lane.b32.xlu0 %v875, 32
    %v878 = vpop.permute.xlu0 %877
    %v880 = vadd.f32 %v870, %v878
    %v881 = vtanh.pop %v880
    %883 = vrot.lane.b32.xlu0 %v881, 32
    %v884 = vpop.permute.xlu0 %883
    %v886 = vmul.f32 %v865, %v884
    %v888 = vrot.slane %v886, 2
    %889 = vrot.lane.b32.xlu0 %v888, 64
    %v890 = vpop.permute.xlu0 %889
    %v891 = vsel %vm254, %v890, 0
    %893 = vmatprep.subr.mxu0 0.0
    %894 = vmatpush1.msra.mxu0 0.0
    %895 = vmatprep.subr.mxu0 0.0
    %896 = vmatpush1.msra.mxu0 0.0
    %897 = vmatprep.subr.mxu0 0.0
    %898 = vmatpush1.msra.mxu0 0.0
    %899 = vmatprep.subr.mxu0 0.0
    %900 = vmatpush1.msra.mxu0 0.0
    %901 = vmatprep.subr.mxu0 0.0
    %902 = vmatpush1.msra.mxu0 0.0
    %903 = vmatprep.subr.mxu0 0.0
    %904 = vmatpush1.msra.mxu0 0.0
    %905 = vmatprep.subr.mxu0 0.0
    %906 = vmatpush1.msra.mxu0 0.0
    %907 = vmatprep.subr.mxu0 0.0
    %908 = vmatpush1.msra.mxu0 0.0
    %909 = vmatprep.subr.mxu0 0.0
    %910 = vmatpush1.msra.mxu0 0.0
    %911 = vmatprep.subr.mxu0 0.0
    %912 = vmatpush1.msra.mxu0 0.0
    %913 = vmatprep.subr.mxu0 0.0
    %914 = vmatpush1.msra.mxu0 0.0
    %915 = vmatprep.subr.mxu0 0.0
    %916 = vmatpush1.msra.mxu0 0.0
    %917 = vmatprep.subr.mxu0 0.0
    %918 = vmatpush1.msra.mxu0 %v251
    %919 = vmatprep.subr.mxu0 0.0
    %920 = vmatpush1.msra.mxu0 %v250
    %921 = vmatprep.subr.mxu0 0.0
    %922 = vmatpush1.msra.mxu0 %v249
    %923 = vmatprep.subr.mxu0 0.0
    %924 = vmatpush1.msra.mxu0 %v248
    %925 = vmatprep.subr.mxu0 0.0
    %926 = vmatpush2.msra.mxu0 0.0
    %927 = vmatprep.subr.mxu0 0.0
    %928 = vmatpush2.msra.mxu0 0.0
    %929 = vmatprep.subr.mxu0 0.0
    %930 = vmatpush2.msra.mxu0 0.0
    %931 = vmatprep.subr.mxu0 0.0
    %932 = vmatpush2.msra.mxu0 0.0
    %933 = vmatprep.subr.mxu0 0.0
    %934 = vmatpush2.msra.mxu0 0.0
    %935 = vmatprep.subr.mxu0 0.0
    %936 = vmatpush2.msra.mxu0 0.0
    %937 = vmatprep.subr.mxu0 0.0
    %938 = vmatpush2.msra.mxu0 0.0
    %939 = vmatprep.subr.mxu0 0.0
    %940 = vmatpush2.msra.mxu0 0.0
    %941 = vmatprep.subr.mxu0 0.0
    %942 = vmatpush2.msra.mxu0 0.0
    %943 = vmatprep.subr.mxu0 0.0
    %944 = vmatpush2.msra.mxu0 0.0
    %945 = vmatprep.subr.mxu0 0.0
    %946 = vmatpush2.msra.mxu0 0.0
    %947 = vmatprep.subr.mxu0 0.0
    %948 = vmatpush2.msra.mxu0 0.0
    %949 = vmatprep.subr.mxu0 0.0
    %950 = vmatpush2.msra.mxu0 0.0
    %951 = vmatprep.subr.mxu0 0.0
    %952 = vmatpush2.msra.mxu0 0.0
    %953 = vmatprep.subr.mxu0 0.0
    %954 = vmatpush2.msra.mxu0 0.0
    %955 = vmatprep.subr.mxu0 0.0
    %956 = vmatpush2.msra.mxu0 0.0
    %957 = vmatprep.mubr.f32.mxu0 0.0
    %958 = vmatmul.mubr.f32.gmra.mxu0 %v891
    %v959 = vpop.f32.mrf.mxu0
    %v960 = vadd.f32 0.0, %v959
    %v961 = vpop.f32.mrf.mxu0
    %962 = vdwg.mxu0
    %v964 = vrot.slane %v960, 4
    %v966 = vadd.f32 %v245, %v964
    %v967 = vxor.u32 %v966, 2147483648
    %v968 = vmul.f32 %v967, 1.442695
    %v969 = vpow.pop %v968
    %v970 = vadd.f32 %v969, 1.0
    %v971 = vrcp.pop %v970
    %v972 = vmul.f32 1.0, %v971
    %v973 = vtanh.pop %v966
    %v975 = vrot.slane %v880, 6
    %v977 = vmul.f32 %v972, %v975
    %979 = vrot.lane.b32.xlu0 %v973, 32
    %v980 = vpop.permute.xlu0 %979
    %v982 = vmul.f32 %v972, %v980
    %984 = vrot.lane.b32.xlu0 %v982, 32
    %v985 = vpop.permute.xlu0 %984
    %v987 = vadd.f32 %v977, %v985
    %v988 = vtanh.pop %v987
    %990 = vrot.lane.b32.xlu0 %v988, 32
    %v991 = vpop.permute.xlu0 %990
    %v993 = vmul.f32 %v972, %v991
    %v995 = vrot.slane %v993, 4
    %996 = vrot.lane.b32.xlu0 %v995, 64
    %v997 = vpop.permute.xlu0 %996
    %v998 = vsel %vm254, %v997, 0
    %1000 = vmatprep.subr.mxu0 0.0
    %1001 = vmatpush1.msra.mxu0 0.0
    %1002 = vmatprep.subr.mxu0 0.0
    %1003 = vmatpush1.msra.mxu0 0.0
    %1004 = vmatprep.subr.mxu0 0.0
    %1005 = vmatpush1.msra.mxu0 0.0
    %1006 = vmatprep.subr.mxu0 0.0
    %1007 = vmatpush1.msra.mxu0 0.0
    %1008 = vmatprep.subr.mxu0 0.0
    %1009 = vmatpush1.msra.mxu0 0.0
    %1010 = vmatprep.subr.mxu0 0.0
    %1011 = vmatpush1.msra.mxu0 0.0
    %1012 = vmatprep.subr.mxu0 0.0
    %1013 = vmatpush1.msra.mxu0 0.0
    %1014 = vmatprep.subr.mxu0 0.0
    %1015 = vmatpush1.msra.mxu0 0.0
    %1016 = vmatprep.subr.mxu0 0.0
    %1017 = vmatpush1.msra.mxu0 0.0
    %1018 = vmatprep.subr.mxu0 0.0
    %1019 = vmatpush1.msra.mxu0 0.0
    %1020 = vmatprep.subr.mxu0 0.0
    %1021 = vmatpush1.msra.mxu0 0.0
    %1022 = vmatprep.subr.mxu0 0.0
    %1023 = vmatpush1.msra.mxu0 0.0
    %1024 = vmatprep.subr.mxu0 0.0
    %1025 = vmatpush1.msra.mxu0 %v251
    %1026 = vmatprep.subr.mxu0 0.0
    %1027 = vmatpush1.msra.mxu0 %v250
    %1028 = vmatprep.subr.mxu0 0.0
    %1029 = vmatpush1.msra.mxu0 %v249
    %1030 = vmatprep.subr.mxu0 0.0
    %1031 = vmatpush1.msra.mxu0 %v248
    %1032 = vmatprep.subr.mxu0 0.0
    %1033 = vmatpush2.msra.mxu0 0.0
    %1034 = vmatprep.subr.mxu0 0.0
    %1035 = vmatpush2.msra.mxu0 0.0
    %1036 = vmatprep.subr.mxu0 0.0
    %1037 = vmatpush2.msra.mxu0 0.0
    %1038 = vmatprep.subr.mxu0 0.0
    %1039 = vmatpush2.msra.mxu0 0.0
    %1040 = vmatprep.subr.mxu0 0.0
    %1041 = vmatpush2.msra.mxu0 0.0
    %1042 = vmatprep.subr.mxu0 0.0
    %1043 = vmatpush2.msra.mxu0 0.0
    %1044 = vmatprep.subr.mxu0 0.0
    %1045 = vmatpush2.msra.mxu0 0.0
    %1046 = vmatprep.subr.mxu0 0.0
    %1047 = vmatpush2.msra.mxu0 0.0
    %1048 = vmatprep.subr.mxu0 0.0
    %1049 = vmatpush2.msra.mxu0 0.0
    %1050 = vmatprep.subr.mxu0 0.0
    %1051 = vmatpush2.msra.mxu0 0.0
    %1052 = vmatprep.subr.mxu0 0.0
    %1053 = vmatpush2.msra.mxu0 0.0
    %1054 = vmatprep.subr.mxu0 0.0
    %1055 = vmatpush2.msra.mxu0 0.0
    %1056 = vmatprep.subr.mxu0 0.0
    %1057 = vmatpush2.msra.mxu0 0.0
    %1058 = vmatprep.subr.mxu0 0.0
    %1059 = vmatpush2.msra.mxu0 0.0
    %1060 = vmatprep.subr.mxu0 0.0
    %1061 = vmatpush2.msra.mxu0 0.0
    %1062 = vmatprep.subr.mxu0 0.0
    %1063 = vmatpush2.msra.mxu0 0.0
    %1064 = vmatprep.mubr.f32.mxu0 0.0
    %1065 = vmatmul.mubr.f32.gmra.mxu0 %v998
    %v1066 = vpop.f32.mrf.mxu0
    %v1067 = vadd.f32 0.0, %v1066
    %v1068 = vpop.f32.mrf.mxu0
    %1069 = vdwg.mxu0
    %v1071 = vrot.slane %v1067, 2
    %v1073 = vadd.f32 %v245, %v1071
    %v1074 = vxor.u32 %v1073, 2147483648
    %v1075 = vmul.f32 %v1074, 1.442695
    %v1076 = vpow.pop %v1075
    %v1077 = vadd.f32 %v1076, 1.0
    %v1078 = vrcp.pop %v1077
    %v1079 = vmul.f32 1.0, %v1078
    %v1080 = vtanh.pop %v1073
    %v1082 = vrot.slane %v987, 6
    %v1084 = vmul.f32 %v1079, %v1082
    %1086 = vrot.lane.b32.xlu0 %v1080, 32
    %v1087 = vpop.permute.xlu0 %1086
    %v1089 = vmul.f32 %v1079, %v1087
    %1091 = vrot.lane.b32.xlu0 %v1089, 32
    %v1092 = vpop.permute.xlu0 %1091
    %v1094 = vadd.f32 %v1084, %v1092
    %v1095 = vtanh.pop %v1094
    %1097 = vrot.lane.b32.xlu0 %v1095, 32
    %v1098 = vpop.permute.xlu0 %1097
    %v1100 = vmul.f32 %v1079, %v1098
    %v1101 = vld [vmem:[#allocation8] sm:$0xff]
    %v1102 = vld [vmem:[#allocation8 + $0x8] sm:$0xff]
    %v1103 = vld [vmem:[#allocation8 + $0x10] sm:$0xff]
    %v1104 = vld [vmem:[#allocation8 + $0x18] sm:$0xff]
    %v1105 = vld [vmem:[#allocation8 + $0x20] sm:$0xff]
    %v1106 = vld [vmem:[#allocation8 + $0x28] sm:$0xff]
    %v1107 = vld [vmem:[#allocation8 + $0x30] sm:$0xff]
    %v1108 = vld [vmem:[#allocation8 + $0x38] sm:$0xff]
    %v1109 = vld [vmem:[%s7] sm:$0x1]
    %v1111 = vlaneseq
    %v1112 = vshrl.u32 %v1111, 7
    %v1113 = vsub.s32 0, %v1112
    %v1114 = vrot.slane %v1109, %v1113
    %s1116 = scalar_lea.vmem [#allocation5], 2
    %v1117 = vld [vmem:[%s1116] sm:$0x3]
    %s1118 = scalar_lea.vmem [#allocation7], 2
    %v1119 = vld [vmem:[%s1118] sm:$0x3]
    %1122 = vrot.lane.b32.xlu0 %v1117, 32
    %v1123 = vpop.permute.xlu0 %1122
    %v1125 = vsel %vm254, %v359, %v1123
    %vm1126 = vcmask 523264
    %v1128 = vsel %vm1126, %v1125, 0
    %1130 = vmatprep.subr.mxu0 0.0
    %1131 = vmatpush1.msra.mxu0 0.0
    %1132 = vmatprep.subr.mxu0 0.0
    %1133 = vmatpush1.msra.mxu0 0.0
    %1134 = vmatprep.subr.mxu0 0.0
    %1135 = vmatpush1.msra.mxu0 0.0
    %1136 = vmatprep.subr.mxu0 0.0
    %1137 = vmatpush1.msra.mxu0 0.0
    %1138 = vmatprep.subr.mxu0 0.0
    %1139 = vmatpush1.msra.mxu0 0.0
    %1140 = vmatprep.subr.mxu0 0.0
    %1141 = vmatpush1.msra.mxu0 0.0
    %1142 = vmatprep.subr.mxu0 0.0
    %1143 = vmatpush1.msra.mxu0 0.0
    %1144 = vmatprep.subr.mxu0 0.0
    %1145 = vmatpush1.msra.mxu0 0.0
    %1146 = vmatprep.subr.mxu0 0.0
    %1147 = vmatpush1.msra.mxu0 %v1108
    %1148 = vmatprep.subr.mxu0 0.0
    %1149 = vmatpush1.msra.mxu0 %v1107
    %1150 = vmatprep.subr.mxu0 0.0
    %1151 = vmatpush1.msra.mxu0 %v1106
    %1152 = vmatprep.subr.mxu0 0.0
    %1153 = vmatpush1.msra.mxu0 %v1105
    %1154 = vmatprep.subr.mxu0 0.0
    %1155 = vmatpush1.msra.mxu0 %v1104
    %1156 = vmatprep.subr.mxu0 0.0
    %1157 = vmatpush1.msra.mxu0 %v1103
    %1158 = vmatprep.subr.mxu0 0.0
    %1159 = vmatpush1.msra.mxu0 %v1102
    %1160 = vmatprep.subr.mxu0 0.0
    %1161 = vmatpush1.msra.mxu0 %v1101
    %1162 = vmatprep.subr.mxu0 0.0
    %1163 = vmatpush2.msra.mxu0 0.0
    %1164 = vmatprep.subr.mxu0 0.0
    %1165 = vmatpush2.msra.mxu0 0.0
    %1166 = vmatprep.subr.mxu0 0.0
    %1167 = vmatpush2.msra.mxu0 0.0
    %1168 = vmatprep.subr.mxu0 0.0
    %1169 = vmatpush2.msra.mxu0 0.0
    %1170 = vmatprep.subr.mxu0 0.0
    %1171 = vmatpush2.msra.mxu0 0.0
    %1172 = vmatprep.subr.mxu0 0.0
    %1173 = vmatpush2.msra.mxu0 0.0
    %1174 = vmatprep.subr.mxu0 0.0
    %1175 = vmatpush2.msra.mxu0 0.0
    %1176 = vmatprep.subr.mxu0 0.0
    %1177 = vmatpush2.msra.mxu0 0.0
    %1178 = vmatprep.subr.mxu0 0.0
    %1179 = vmatpush2.msra.mxu0 0.0
    %1180 = vmatprep.subr.mxu0 0.0
    %1181 = vmatpush2.msra.mxu0 0.0
    %1182 = vmatprep.subr.mxu0 0.0
    %1183 = vmatpush2.msra.mxu0 0.0
    %1184 = vmatprep.subr.mxu0 0.0
    %1185 = vmatpush2.msra.mxu0 0.0
    %1186 = vmatprep.subr.mxu0 0.0
    %1187 = vmatpush2.msra.mxu0 0.0
    %1188 = vmatprep.subr.mxu0 0.0
    %1189 = vmatpush2.msra.mxu0 0.0
    %1190 = vmatprep.subr.mxu0 0.0
    %1191 = vmatpush2.msra.mxu0 0.0
    %1192 = vmatprep.subr.mxu0 0.0
    %1193 = vmatpush2.msra.mxu0 0.0
    %1194 = vmatprep.mubr.f32.mxu0 0.0
    %1195 = vmatmul.mubr.f32.gmra.mxu0 %v1128
    %v1196 = vpop.f32.mrf.mxu0
    %v1197 = vadd.f32 %v1114, %v1196
    %v1198 = vpop.f32.mrf.mxu0
    %1199 = vdwg.mxu0
    %v1200 = vxor.u32 %v1197, 2147483648
    %v1201 = vmul.f32 %v1200, 1.442695
    %v1202 = vpow.pop %v1201
    %v1203 = vadd.f32 %v1202, 1.0
    %v1204 = vrcp.pop %v1203
    %v1205 = vmul.f32 1.0, %v1204
    %v1206 = vtanh.pop %v1197
    %1208 = vrot.lane.b32.xlu0 %v1119, 32
    %v1209 = vpop.permute.xlu0 %1208
    %v1211 = vmul.f32 %v1205, %v1209
    %1213 = vrot.lane.b32.xlu0 %v1206, 32
    %v1214 = vpop.permute.xlu0 %1213
    %v1216 = vmul.f32 %v1205, %v1214
    %1218 = vrot.lane.b32.xlu0 %v1216, 32
    %v1219 = vpop.permute.xlu0 %1218
    %v1221 = vadd.f32 %v1211, %v1219
    %v1222 = vtanh.pop %v1221
    %1224 = vrot.lane.b32.xlu0 %v1222, 32
    %v1225 = vpop.permute.xlu0 %1224
    %v1227 = vmul.f32 %v1205, %v1225
    %1228 = vrot.lane.b32.xlu0 %v462, 64
    %v1229 = vpop.permute.xlu0 %1228
    %v1232 = vrot.slane %v1227, 6
    %1233 = vrot.lane.b32.xlu0 %v1232, 96
    %v1234 = vpop.permute.xlu0 %1233
    %v1236 = vsel %vm254, %v1229, %v1234
    %v1238 = vrot.slane %v1236, 2
    %v1239 = vsel %vm1126, %v1238, 0
    %1241 = vmatprep.subr.mxu0 0.0
    %1242 = vmatpush1.msra.mxu0 0.0
    %1243 = vmatprep.subr.mxu0 0.0
    %1244 = vmatpush1.msra.mxu0 0.0
    %1245 = vmatprep.subr.mxu0 0.0
    %1246 = vmatpush1.msra.mxu0 0.0
    %1247 = vmatprep.subr.mxu0 0.0
    %1248 = vmatpush1.msra.mxu0 0.0
    %1249 = vmatprep.subr.mxu0 0.0
    %1250 = vmatpush1.msra.mxu0 0.0
    %1251 = vmatprep.subr.mxu0 0.0
    %1252 = vmatpush1.msra.mxu0 0.0
    %1253 = vmatprep.subr.mxu0 0.0
    %1254 = vmatpush1.msra.mxu0 0.0
    %1255 = vmatprep.subr.mxu0 0.0
    %1256 = vmatpush1.msra.mxu0 0.0
    %1257 = vmatprep.subr.mxu0 0.0
    %1258 = vmatpush1.msra.mxu0 %v1108
    %1259 = vmatprep.subr.mxu0 0.0
    %1260 = vmatpush1.msra.mxu0 %v1107
    %1261 = vmatprep.subr.mxu0 0.0
    %1262 = vmatpush1.msra.mxu0 %v1106
    %1263 = vmatprep.subr.mxu0 0.0
    %1264 = vmatpush1.msra.mxu0 %v1105
    %1265 = vmatprep.subr.mxu0 0.0
    %1266 = vmatpush1.msra.mxu0 %v1104
    %1267 = vmatprep.subr.mxu0 0.0
    %1268 = vmatpush1.msra.mxu0 %v1103
    %1269 = vmatprep.subr.mxu0 0.0
    %1270 = vmatpush1.msra.mxu0 %v1102
    %1271 = vmatprep.subr.mxu0 0.0
    %1272 = vmatpush1.msra.mxu0 %v1101
    %1273 = vmatprep.subr.mxu0 0.0
    %1274 = vmatpush2.msra.mxu0 0.0
    %1275 = vmatprep.subr.mxu0 0.0
    %1276 = vmatpush2.msra.mxu0 0.0
    %1277 = vmatprep.subr.mxu0 0.0
    %1278 = vmatpush2.msra.mxu0 0.0
    %1279 = vmatprep.subr.mxu0 0.0
    %1280 = vmatpush2.msra.mxu0 0.0
    %1281 = vmatprep.subr.mxu0 0.0
    %1282 = vmatpush2.msra.mxu0 0.0
    %1283 = vmatprep.subr.mxu0 0.0
    %1284 = vmatpush2.msra.mxu0 0.0
    %1285 = vmatprep.subr.mxu0 0.0
    %1286 = vmatpush2.msra.mxu0 0.0
    %1287 = vmatprep.subr.mxu0 0.0
    %1288 = vmatpush2.msra.mxu0 0.0
    %1289 = vmatprep.subr.mxu0 0.0
    %1290 = vmatpush2.msra.mxu0 0.0
    %1291 = vmatprep.subr.mxu0 0.0
    %1292 = vmatpush2.msra.mxu0 0.0
    %1293 = vmatprep.subr.mxu0 0.0
    %1294 = vmatpush2.msra.mxu0 0.0
    %1295 = vmatprep.subr.mxu0 0.0
    %1296 = vmatpush2.msra.mxu0 0.0
    %1297 = vmatprep.subr.mxu0 0.0
    %1298 = vmatpush2.msra.mxu0 0.0
    %1299 = vmatprep.subr.mxu0 0.0
    %1300 = vmatpush2.msra.mxu0 0.0
    %1301 = vmatprep.subr.mxu0 0.0
    %1302 = vmatpush2.msra.mxu0 0.0
    %1303 = vmatprep.subr.mxu0 0.0
    %1304 = vmatpush2.msra.mxu0 0.0
    %1305 = vmatprep.mubr.f32.mxu0 0.0
    %1306 = vmatmul.mubr.f32.gmra.mxu0 %v1239
    %v1307 = vpop.f32.mrf.mxu0
    %v1308 = vadd.f32 %v1114, %v1307
    %v1309 = vpop.f32.mrf.mxu0
    %1310 = vdwg.mxu0
    %v1311 = vxor.u32 %v1308, 2147483648
    %v1312 = vmul.f32 %v1311, 1.442695
    %v1313 = vpow.pop %v1312
    %v1314 = vadd.f32 %v1313, 1.0
    %v1315 = vrcp.pop %v1314
    %v1316 = vmul.f32 1.0, %v1315
    %v1317 = vtanh.pop %v1308
    %v1318 = vmul.f32 %v1316, %v1221
    %1320 = vrot.lane.b32.xlu0 %v1317, 32
    %v1321 = vpop.permute.xlu0 %1320
    %v1323 = vmul.f32 %v1316, %v1321
    %1325 = vrot.lane.b32.xlu0 %v1323, 32
    %v1326 = vpop.permute.xlu0 %1325
    %v1328 = vadd.f32 %v1318, %v1326
    %v1329 = vtanh.pop %v1328
    %1331 = vrot.lane.b32.xlu0 %v1329, 32
    %v1332 = vpop.permute.xlu0 %1331
    %v1334 = vmul.f32 %v1316, %v1332
    %1335 = vrot.lane.b32.xlu0 %v569, 64
    %v1336 = vpop.permute.xlu0 %1335
    %v1339 = vrot.slane %v1334, 4
    %1340 = vrot.lane.b32.xlu0 %v1339, 96
    %v1341 = vpop.permute.xlu0 %1340
    %v1343 = vsel %vm254, %v1336, %v1341
    %v1345 = vrot.slane %v1343, 4
    %v1346 = vsel %vm1126, %v1345, 0
    %1348 = vmatprep.subr.mxu0 0.0
    %1349 = vmatpush1.msra.mxu0 0.0
    %1350 = vmatprep.subr.mxu0 0.0
    %1351 = vmatpush1.msra.mxu0 0.0
    %1352 = vmatprep.subr.mxu0 0.0
    %1353 = vmatpush1.msra.mxu0 0.0
    %1354 = vmatprep.subr.mxu0 0.0
    %1355 = vmatpush1.msra.mxu0 0.0
    %1356 = vmatprep.subr.mxu0 0.0
    %1357 = vmatpush1.msra.mxu0 0.0
    %1358 = vmatprep.subr.mxu0 0.0
    %1359 = vmatpush1.msra.mxu0 0.0
    %1360 = vmatprep.subr.mxu0 0.0
    %1361 = vmatpush1.msra.mxu0 0.0
    %1362 = vmatprep.subr.mxu0 0.0
    %1363 = vmatpush1.msra.mxu0 0.0
    %1364 = vmatprep.subr.mxu0 0.0
    %1365 = vmatpush1.msra.mxu0 %v1108
    %1366 = vmatprep.subr.mxu0 0.0
    %1367 = vmatpush1.msra.mxu0 %v1107
    %1368 = vmatprep.subr.mxu0 0.0
    %1369 = vmatpush1.msra.mxu0 %v1106
    %1370 = vmatprep.subr.mxu0 0.0
    %1371 = vmatpush1.msra.mxu0 %v1105
    %1372 = vmatprep.subr.mxu0 0.0
    %1373 = vmatpush1.msra.mxu0 %v1104
    %1374 = vmatprep.subr.mxu0 0.0
    %1375 = vmatpush1.msra.mxu0 %v1103
    %1376 = vmatprep.subr.mxu0 0.0
    %1377 = vmatpush1.msra.mxu0 %v1102
    %1378 = vmatprep.subr.mxu0 0.0
    %1379 = vmatpush1.msra.mxu0 %v1101
    %1380 = vmatprep.subr.mxu0 0.0
    %1381 = vmatpush2.msra.mxu0 0.0
    %1382 = vmatprep.subr.mxu0 0.0
    %1383 = vmatpush2.msra.mxu0 0.0
    %1384 = vmatprep.subr.mxu0 0.0
    %1385 = vmatpush2.msra.mxu0 0.0
    %1386 = vmatprep.subr.mxu0 0.0
    %1387 = vmatpush2.msra.mxu0 0.0
    %1388 = vmatprep.subr.mxu0 0.0
    %1389 = vmatpush2.msra.mxu0 0.0
    %1390 = vmatprep.subr.mxu0 0.0
    %1391 = vmatpush2.msra.mxu0 0.0
    %1392 = vmatprep.subr.mxu0 0.0
    %1393 = vmatpush2.msra.mxu0 0.0
    %1394 = vmatprep.subr.mxu0 0.0
    %1395 = vmatpush2.msra.mxu0 0.0
    %1396 = vmatprep.subr.mxu0 0.0
    %1397 = vmatpush2.msra.mxu0 0.0
    %1398 = vmatprep.subr.mxu0 0.0
    %1399 = vmatpush2.msra.mxu0 0.0
    %1400 = vmatprep.subr.mxu0 0.0
    %1401 = vmatpush2.msra.mxu0 0.0
    %1402 = vmatprep.subr.mxu0 0.0
    %1403 = vmatpush2.msra.mxu0 0.0
    %1404 = vmatprep.subr.mxu0 0.0
    %1405 = vmatpush2.msra.mxu0 0.0
    %1406 = vmatprep.subr.mxu0 0.0
    %1407 = vmatpush2.msra.mxu0 0.0
    %1408 = vmatprep.subr.mxu0 0.0
    %1409 = vmatpush2.msra.mxu0 0.0
    %1410 = vmatprep.subr.mxu0 0.0
    %1411 = vmatpush2.msra.mxu0 0.0
    %1412 = vmatprep.mubr.f32.mxu0 0.0
    %1413 = vmatmul.mubr.f32.gmra.mxu0 %v1346
    %v1414 = vpop.f32.mrf.mxu0
    %v1415 = vadd.f32 %v1114, %v1414
    %v1416 = vpop.f32.mrf.mxu0
    %1417 = vdwg.mxu0
    %v1418 = vxor.u32 %v1415, 2147483648
    %v1419 = vmul.f32 %v1418, 1.442695
    %v1420 = vpow.pop %v1419
    %v1421 = vadd.f32 %v1420, 1.0
    %v1422 = vrcp.pop %v1421
    %v1423 = vmul.f32 1.0, %v1422
    %v1424 = vtanh.pop %v1415
    %v1425 = vmul.f32 %v1423, %v1328
    %1427 = vrot.lane.b32.xlu0 %v1424, 32
    %v1428 = vpop.permute.xlu0 %1427
    %v1430 = vmul.f32 %v1423, %v1428
    %1432 = vrot.lane.b32.xlu0 %v1430, 32
    %v1433 = vpop.permute.xlu0 %1432
    %v1435 = vadd.f32 %v1425, %v1433
    %v1436 = vtanh.pop %v1435
    %1438 = vrot.lane.b32.xlu0 %v1436, 32
    %v1439 = vpop.permute.xlu0 %1438
    %v1441 = vmul.f32 %v1423, %v1439
    %1442 = vrot.lane.b32.xlu0 %v676, 64
    %v1443 = vpop.permute.xlu0 %1442
    %v1446 = vrot.slane %v1441, 2
    %1447 = vrot.lane.b32.xlu0 %v1446, 96
    %v1448 = vpop.permute.xlu0 %1447
    %v1450 = vsel %vm254, %v1443, %v1448
    %v1452 = vrot.slane %v1450, 6
    %v1453 = vsel %vm1126, %v1452, 0
    %1455 = vmatprep.subr.mxu0 0.0
    %1456 = vmatpush1.msra.mxu0 0.0
    %1457 = vmatprep.subr.mxu0 0.0
    %1458 = vmatpush1.msra.mxu0 0.0
    %1459 = vmatprep.subr.mxu0 0.0
    %1460 = vmatpush1.msra.mxu0 0.0
    %1461 = vmatprep.subr.mxu0 0.0
    %1462 = vmatpush1.msra.mxu0 0.0
    %1463 = vmatprep.subr.mxu0 0.0
    %1464 = vmatpush1.msra.mxu0 0.0
    %1465 = vmatprep.subr.mxu0 0.0
    %1466 = vmatpush1.msra.mxu0 0.0
    %1467 = vmatprep.subr.mxu0 0.0
    %1468 = vmatpush1.msra.mxu0 0.0
    %1469 = vmatprep.subr.mxu0 0.0
    %1470 = vmatpush1.msra.mxu0 0.0
    %1471 = vmatprep.subr.mxu0 0.0
    %1472 = vmatpush1.msra.mxu0 %v1108
    %1473 = vmatprep.subr.mxu0 0.0
    %1474 = vmatpush1.msra.mxu0 %v1107
    %1475 = vmatprep.subr.mxu0 0.0
    %1476 = vmatpush1.msra.mxu0 %v1106
    %1477 = vmatprep.subr.mxu0 0.0
    %1478 = vmatpush1.msra.mxu0 %v1105
    %1479 = vmatprep.subr.mxu0 0.0
    %1480 = vmatpush1.msra.mxu0 %v1104
    %1481 = vmatprep.subr.mxu0 0.0
    %1482 = vmatpush1.msra.mxu0 %v1103
    %1483 = vmatprep.subr.mxu0 0.0
    %1484 = vmatpush1.msra.mxu0 %v1102
    %1485 = vmatprep.subr.mxu0 0.0
    %1486 = vmatpush1.msra.mxu0 %v1101
    %1487 = vmatprep.subr.mxu0 0.0
    %1488 = vmatpush2.msra.mxu0 0.0
    %1489 = vmatprep.subr.mxu0 0.0
    %1490 = vmatpush2.msra.mxu0 0.0
    %1491 = vmatprep.subr.mxu0 0.0
    %1492 = vmatpush2.msra.mxu0 0.0
    %1493 = vmatprep.subr.mxu0 0.0
    %1494 = vmatpush2.msra.mxu0 0.0
    %1495 = vmatprep.subr.mxu0 0.0
    %1496 = vmatpush2.msra.mxu0 0.0
    %1497 = vmatprep.subr.mxu0 0.0
    %1498 = vmatpush2.msra.mxu0 0.0
    %1499 = vmatprep.subr.mxu0 0.0
    %1500 = vmatpush2.msra.mxu0 0.0
    %1501 = vmatprep.subr.mxu0 0.0
    %1502 = vmatpush2.msra.mxu0 0.0
    %1503 = vmatprep.subr.mxu0 0.0
    %1504 = vmatpush2.msra.mxu0 0.0
    %1505 = vmatprep.subr.mxu0 0.0
    %1506 = vmatpush2.msra.mxu0 0.0
    %1507 = vmatprep.subr.mxu0 0.0
    %1508 = vmatpush2.msra.mxu0 0.0
    %1509 = vmatprep.subr.mxu0 0.0
    %1510 = vmatpush2.msra.mxu0 0.0
    %1511 = vmatprep.subr.mxu0 0.0
    %1512 = vmatpush2.msra.mxu0 0.0
    %1513 = vmatprep.subr.mxu0 0.0
    %1514 = vmatpush2.msra.mxu0 0.0
    %1515 = vmatprep.subr.mxu0 0.0
    %1516 = vmatpush2.msra.mxu0 0.0
    %1517 = vmatprep.subr.mxu0 0.0
    %1518 = vmatpush2.msra.mxu0 0.0
    %1519 = vmatprep.mubr.f32.mxu0 0.0
    %1520 = vmatmul.mubr.f32.gmra.mxu0 %v1453
    %v1521 = vpop.f32.mrf.mxu0
    %v1522 = vadd.f32 %v1114, %v1521
    %v1523 = vpop.f32.mrf.mxu0
    %1524 = vdwg.mxu0
    %v1525 = vxor.u32 %v1522, 2147483648
    %v1526 = vmul.f32 %v1525, 1.442695
    %v1527 = vpow.pop %v1526
    %v1528 = vadd.f32 %v1527, 1.0
    %v1529 = vrcp.pop %v1528
    %v1530 = vmul.f32 1.0, %v1529
    %v1531 = vtanh.pop %v1522
    %v1532 = vmul.f32 %v1530, %v1435
    %1534 = vrot.lane.b32.xlu0 %v1531, 32
    %v1535 = vpop.permute.xlu0 %1534
    %v1537 = vmul.f32 %v1530, %v1535
    %1539 = vrot.lane.b32.xlu0 %v1537, 32
    %v1540 = vpop.permute.xlu0 %1539
    %v1542 = vadd.f32 %v1532, %v1540
    %v1543 = vtanh.pop %v1542
    %1545 = vrot.lane.b32.xlu0 %v1543, 32
    %v1546 = vpop.permute.xlu0 %1545
    %v1548 = vmul.f32 %v1530, %v1546
    %1551 = vrot.lane.b32.xlu0 %v1548, 96
    %v1552 = vpop.permute.xlu0 %1551
    %v1554 = vsel %vm254, %v783, %v1552
    %v1556 = vsel %vm1126, %v1554, 0
    %1558 = vmatprep.subr.mxu0 0.0
    %1559 = vmatpush1.msra.mxu0 0.0
    %1560 = vmatprep.subr.mxu0 0.0
    %1561 = vmatpush1.msra.mxu0 0.0
    %1562 = vmatprep.subr.mxu0 0.0
    %1563 = vmatpush1.msra.mxu0 0.0
    %1564 = vmatprep.subr.mxu0 0.0
    %1565 = vmatpush1.msra.mxu0 0.0
    %1566 = vmatprep.subr.mxu0 0.0
    %1567 = vmatpush1.msra.mxu0 0.0
    %1568 = vmatprep.subr.mxu0 0.0
    %1569 = vmatpush1.msra.mxu0 0.0
    %1570 = vmatprep.subr.mxu0 0.0
    %1571 = vmatpush1.msra.mxu0 0.0
    %1572 = vmatprep.subr.mxu0 0.0
    %1573 = vmatpush1.msra.mxu0 0.0
    %1574 = vmatprep.subr.mxu0 0.0
    %1575 = vmatpush1.msra.mxu0 %v1108
    %1576 = vmatprep.subr.mxu0 0.0
    %1577 = vmatpush1.msra.mxu0 %v1107
    %1578 = vmatprep.subr.mxu0 0.0
    %1579 = vmatpush1.msra.mxu0 %v1106
    %1580 = vmatprep.subr.mxu0 0.0
    %1581 = vmatpush1.msra.mxu0 %v1105
    %1582 = vmatprep.subr.mxu0 0.0
    %1583 = vmatpush1.msra.mxu0 %v1104
    %1584 = vmatprep.subr.mxu0 0.0
    %1585 = vmatpush1.msra.mxu0 %v1103
    %1586 = vmatprep.subr.mxu0 0.0
    %1587 = vmatpush1.msra.mxu0 %v1102
    %1588 = vmatprep.subr.mxu0 0.0
    %1589 = vmatpush1.msra.mxu0 %v1101
    %1590 = vmatprep.subr.mxu0 0.0
    %1591 = vmatpush2.msra.mxu0 0.0
    %1592 = vmatprep.subr.mxu0 0.0
    %1593 = vmatpush2.msra.mxu0 0.0
    %1594 = vmatprep.subr.mxu0 0.0
    %1595 = vmatpush2.msra.mxu0 0.0
    %1596 = vmatprep.subr.mxu0 0.0
    %1597 = vmatpush2.msra.mxu0 0.0
    %1598 = vmatprep.subr.mxu0 0.0
    %1599 = vmatpush2.msra.mxu0 0.0
    %1600 = vmatprep.subr.mxu0 0.0
    %1601 = vmatpush2.msra.mxu0 0.0
    %1602 = vmatprep.subr.mxu0 0.0
    %1603 = vmatpush2.msra.mxu0 0.0
    %1604 = vmatprep.subr.mxu0 0.0
    %1605 = vmatpush2.msra.mxu0 0.0
    %1606 = vmatprep.subr.mxu0 0.0
    %1607 = vmatpush2.msra.mxu0 0.0
    %1608 = vmatprep.subr.mxu0 0.0
    %1609 = vmatpush2.msra.mxu0 0.0
    %1610 = vmatprep.subr.mxu0 0.0
    %1611 = vmatpush2.msra.mxu0 0.0
    %1612 = vmatprep.subr.mxu0 0.0
    %1613 = vmatpush2.msra.mxu0 0.0
    %1614 = vmatprep.subr.mxu0 0.0
    %1615 = vmatpush2.msra.mxu0 0.0
    %1616 = vmatprep.subr.mxu0 0.0
    %1617 = vmatpush2.msra.mxu0 0.0
    %1618 = vmatprep.subr.mxu0 0.0
    %1619 = vmatpush2.msra.mxu0 0.0
    %1620 = vmatprep.subr.mxu0 0.0
    %1621 = vmatpush2.msra.mxu0 0.0
    %1622 = vmatprep.mubr.f32.mxu0 0.0
    %1623 = vmatmul.mubr.f32.gmra.mxu0 %v1556
    %v1624 = vpop.f32.mrf.mxu0
    %v1625 = vadd.f32 %v1114, %v1624
    %v1626 = vpop.f32.mrf.mxu0
    %1627 = vdwg.mxu0
    %v1628 = vxor.u32 %v1625, 2147483648
    %v1629 = vmul.f32 %v1628, 1.442695
    %v1630 = vpow.pop %v1629
    %v1631 = vadd.f32 %v1630, 1.0
    %v1632 = vrcp.pop %v1631
    %v1633 = vmul.f32 1.0, %v1632
    %v1634 = vtanh.pop %v1625
    %v1635 = vmul.f32 %v1633, %v1542
    %1637 = vrot.lane.b32.xlu0 %v1634, 32
    %v1638 = vpop.permute.xlu0 %1637
    %v1640 = vmul.f32 %v1633, %v1638
    %1642 = vrot.lane.b32.xlu0 %v1640, 32
    %v1643 = vpop.permute.xlu0 %1642
    %v1645 = vadd.f32 %v1635, %v1643
    %v1646 = vtanh.pop %v1645
    %1648 = vrot.lane.b32.xlu0 %v1646, 32
    %v1649 = vpop.permute.xlu0 %1648
    %v1651 = vmul.f32 %v1633, %v1649
    %1652 = vrot.lane.b32.xlu0 %v886, 64
    %v1653 = vpop.permute.xlu0 %1652
    %v1656 = vrot.slane %v1651, 6
    %1657 = vrot.lane.b32.xlu0 %v1656, 96
    %v1658 = vpop.permute.xlu0 %1657
    %v1660 = vsel %vm254, %v1653, %v1658
    %v1662 = vrot.slane %v1660, 2
    %v1663 = vsel %vm1126, %v1662, 0
    %1665 = vmatprep.subr.mxu0 0.0
    %1666 = vmatpush1.msra.mxu0 0.0
    %1667 = vmatprep.subr.mxu0 0.0
    %1668 = vmatpush1.msra.mxu0 0.0
    %1669 = vmatprep.subr.mxu0 0.0
    %1670 = vmatpush1.msra.mxu0 0.0
    %1671 = vmatprep.subr.mxu0 0.0
    %1672 = vmatpush1.msra.mxu0 0.0
    %1673 = vmatprep.subr.mxu0 0.0
    %1674 = vmatpush1.msra.mxu0 0.0
    %1675 = vmatprep.subr.mxu0 0.0
    %1676 = vmatpush1.msra.mxu0 0.0
    %1677 = vmatprep.subr.mxu0 0.0
    %1678 = vmatpush1.msra.mxu0 0.0
    %1679 = vmatprep.subr.mxu0 0.0
    %1680 = vmatpush1.msra.mxu0 0.0
    %1681 = vmatprep.subr.mxu0 0.0
    %1682 = vmatpush1.msra.mxu0 %v1108
    %1683 = vmatprep.subr.mxu0 0.0
    %1684 = vmatpush1.msra.mxu0 %v1107
    %1685 = vmatprep.subr.mxu0 0.0
    %1686 = vmatpush1.msra.mxu0 %v1106
    %1687 = vmatprep.subr.mxu0 0.0
    %1688 = vmatpush1.msra.mxu0 %v1105
    %1689 = vmatprep.subr.mxu0 0.0
    %1690 = vmatpush1.msra.mxu0 %v1104
    %1691 = vmatprep.subr.mxu0 0.0
    %1692 = vmatpush1.msra.mxu0 %v1103
    %1693 = vmatprep.subr.mxu0 0.0
    %1694 = vmatpush1.msra.mxu0 %v1102
    %1695 = vmatprep.subr.mxu0 0.0
    %1696 = vmatpush1.msra.mxu0 %v1101
    %1697 = vmatprep.subr.mxu0 0.0
    %1698 = vmatpush2.msra.mxu0 0.0
    %1699 = vmatprep.subr.mxu0 0.0
    %1700 = vmatpush2.msra.mxu0 0.0
    %1701 = vmatprep.subr.mxu0 0.0
    %1702 = vmatpush2.msra.mxu0 0.0
    %1703 = vmatprep.subr.mxu0 0.0
    %1704 = vmatpush2.msra.mxu0 0.0
    %1705 = vmatprep.subr.mxu0 0.0
    %1706 = vmatpush2.msra.mxu0 0.0
    %1707 = vmatprep.subr.mxu0 0.0
    %1708 = vmatpush2.msra.mxu0 0.0
    %1709 = vmatprep.subr.mxu0 0.0
    %1710 = vmatpush2.msra.mxu0 0.0
    %1711 = vmatprep.subr.mxu0 0.0
    %1712 = vmatpush2.msra.mxu0 0.0
    %1713 = vmatprep.subr.mxu0 0.0
    %1714 = vmatpush2.msra.mxu0 0.0
    %1715 = vmatprep.subr.mxu0 0.0
    %1716 = vmatpush2.msra.mxu0 0.0
    %1717 = vmatprep.subr.mxu0 0.0
    %1718 = vmatpush2.msra.mxu0 0.0
    %1719 = vmatprep.subr.mxu0 0.0
    %1720 = vmatpush2.msra.mxu0 0.0
    %1721 = vmatprep.subr.mxu0 0.0
    %1722 = vmatpush2.msra.mxu0 0.0
    %1723 = vmatprep.subr.mxu0 0.0
    %1724 = vmatpush2.msra.mxu0 0.0
    %1725 = vmatprep.subr.mxu0 0.0
    %1726 = vmatpush2.msra.mxu0 0.0
    %1727 = vmatprep.subr.mxu0 0.0
    %1728 = vmatpush2.msra.mxu0 0.0
    %1729 = vmatprep.mubr.f32.mxu0 0.0
    %1730 = vmatmul.mubr.f32.gmra.mxu0 %v1663
    %v1731 = vpop.f32.mrf.mxu0
    %v1732 = vadd.f32 %v1114, %v1731
    %v1733 = vpop.f32.mrf.mxu0
    %1734 = vdwg.mxu0
    %v1735 = vxor.u32 %v1732, 2147483648
    %v1736 = vmul.f32 %v1735, 1.442695
    %v1737 = vpow.pop %v1736
    %v1738 = vadd.f32 %v1737, 1.0
    %v1739 = vrcp.pop %v1738
    %v1740 = vmul.f32 1.0, %v1739
    %v1741 = vtanh.pop %v1732
    %v1742 = vmul.f32 %v1740, %v1645
    %1744 = vrot.lane.b32.xlu0 %v1741, 32
    %v1745 = vpop.permute.xlu0 %1744
    %v1747 = vmul.f32 %v1740, %v1745
    %1749 = vrot.lane.b32.xlu0 %v1747, 32
    %v1750 = vpop.permute.xlu0 %1749
    %v1752 = vadd.f32 %v1742, %v1750
    %v1753 = vtanh.pop %v1752
    %1755 = vrot.lane.b32.xlu0 %v1753, 32
    %v1756 = vpop.permute.xlu0 %1755
    %v1758 = vmul.f32 %v1740, %v1756
    %1759 = vrot.lane.b32.xlu0 %v993, 64
    %v1760 = vpop.permute.xlu0 %1759
    %v1763 = vrot.slane %v1758, 4
    %1764 = vrot.lane.b32.xlu0 %v1763, 96
    %v1765 = vpop.permute.xlu0 %1764
    %v1767 = vsel %vm254, %v1760, %v1765
    %v1769 = vrot.slane %v1767, 4
    %v1770 = vsel %vm1126, %v1769, 0
    %1772 = vmatprep.subr.mxu0 0.0
    %1773 = vmatpush1.msra.mxu0 0.0
    %1774 = vmatprep.subr.mxu0 0.0
    %1775 = vmatpush1.msra.mxu0 0.0
    %1776 = vmatprep.subr.mxu0 0.0
    %1777 = vmatpush1.msra.mxu0 0.0
    %1778 = vmatprep.subr.mxu0 0.0
    %1779 = vmatpush1.msra.mxu0 0.0
    %1780 = vmatprep.subr.mxu0 0.0
    %1781 = vmatpush1.msra.mxu0 0.0
    %1782 = vmatprep.subr.mxu0 0.0
    %1783 = vmatpush1.msra.mxu0 0.0
    %1784 = vmatprep.subr.mxu0 0.0
    %1785 = vmatpush1.msra.mxu0 0.0
    %1786 = vmatprep.subr.mxu0 0.0
    %1787 = vmatpush1.msra.mxu0 0.0
    %1788 = vmatprep.subr.mxu0 0.0
    %1789 = vmatpush1.msra.mxu0 %v1108
    %1790 = vmatprep.subr.mxu0 0.0
    %1791 = vmatpush1.msra.mxu0 %v1107
    %1792 = vmatprep.subr.mxu0 0.0
    %1793 = vmatpush1.msra.mxu0 %v1106
    %1794 = vmatprep.subr.mxu0 0.0
    %1795 = vmatpush1.msra.mxu0 %v1105
    %1796 = vmatprep.subr.mxu0 0.0
    %1797 = vmatpush1.msra.mxu0 %v1104
    %1798 = vmatprep.subr.mxu0 0.0
    %1799 = vmatpush1.msra.mxu0 %v1103
    %1800 = vmatprep.subr.mxu0 0.0
    %1801 = vmatpush1.msra.mxu0 %v1102
    %1802 = vmatprep.subr.mxu0 0.0
    %1803 = vmatpush1.msra.mxu0 %v1101
    %1804 = vmatprep.subr.mxu0 0.0
    %1805 = vmatpush2.msra.mxu0 0.0
    %1806 = vmatprep.subr.mxu0 0.0
    %1807 = vmatpush2.msra.mxu0 0.0
    %1808 = vmatprep.subr.mxu0 0.0
    %1809 = vmatpush2.msra.mxu0 0.0
    %1810 = vmatprep.subr.mxu0 0.0
    %1811 = vmatpush2.msra.mxu0 0.0
    %1812 = vmatprep.subr.mxu0 0.0
    %1813 = vmatpush2.msra.mxu0 0.0
    %1814 = vmatprep.subr.mxu0 0.0
    %1815 = vmatpush2.msra.mxu0 0.0
    %1816 = vmatprep.subr.mxu0 0.0
    %1817 = vmatpush2.msra.mxu0 0.0
    %1818 = vmatprep.subr.mxu0 0.0
    %1819 = vmatpush2.msra.mxu0 0.0
    %1820 = vmatprep.subr.mxu0 0.0
    %1821 = vmatpush2.msra.mxu0 0.0
    %1822 = vmatprep.subr.mxu0 0.0
    %1823 = vmatpush2.msra.mxu0 0.0
    %1824 = vmatprep.subr.mxu0 0.0
    %1825 = vmatpush2.msra.mxu0 0.0
    %1826 = vmatprep.subr.mxu0 0.0
    %1827 = vmatpush2.msra.mxu0 0.0
    %1828 = vmatprep.subr.mxu0 0.0
    %1829 = vmatpush2.msra.mxu0 0.0
    %1830 = vmatprep.subr.mxu0 0.0
    %1831 = vmatpush2.msra.mxu0 0.0
    %1832 = vmatprep.subr.mxu0 0.0
    %1833 = vmatpush2.msra.mxu0 0.0
    %1834 = vmatprep.subr.mxu0 0.0
    %1835 = vmatpush2.msra.mxu0 0.0
    %1836 = vmatprep.mubr.f32.mxu0 0.0
    %1837 = vmatmul.mubr.f32.gmra.mxu0 %v1770
    %v1838 = vpop.f32.mrf.mxu0
    %v1839 = vadd.f32 %v1114, %v1838
    %v1840 = vpop.f32.mrf.mxu0
    %1841 = vdwg.mxu0
    %v1842 = vxor.u32 %v1839, 2147483648
    %v1843 = vmul.f32 %v1842, 1.442695
    %v1844 = vpow.pop %v1843
    %v1845 = vadd.f32 %v1844, 1.0
    %v1846 = vrcp.pop %v1845
    %v1847 = vmul.f32 1.0, %v1846
    %v1848 = vtanh.pop %v1839
    %v1849 = vmul.f32 %v1847, %v1752
    %1851 = vrot.lane.b32.xlu0 %v1848, 32
    %v1852 = vpop.permute.xlu0 %1851
    %v1854 = vmul.f32 %v1847, %v1852
    %1856 = vrot.lane.b32.xlu0 %v1854, 32
    %v1857 = vpop.permute.xlu0 %1856
    %v1859 = vadd.f32 %v1849, %v1857
    %v1860 = vtanh.pop %v1859
    %1862 = vrot.lane.b32.xlu0 %v1860, 32
    %v1863 = vpop.permute.xlu0 %1862
    %v1865 = vmul.f32 %v1847, %v1863
    %1867 = vrot.lane.b32.xlu0 %v1100, 64
    %v1868 = vpop.permute.xlu0 %1867
    %v1871 = vrot.slane %v1865, 2
    %1872 = vrot.lane.b32.xlu0 %v1871, 96
    %v1873 = vpop.permute.xlu0 %1872
    %v1875 = vsel %vm254, %v1868, %v1873
    %v1877 = vrot.slane %v1875, 6
    %v1878 = vsel %vm1126, %v1877, 0
    %1880 = vmatprep.subr.mxu0 0.0
    %1881 = vmatpush1.msra.mxu0 0.0
    %1882 = vmatprep.subr.mxu0 0.0
    %1883 = vmatpush1.msra.mxu0 0.0
    %1884 = vmatprep.subr.mxu0 0.0
    %1885 = vmatpush1.msra.mxu0 0.0
    %1886 = vmatprep.subr.mxu0 0.0
    %1887 = vmatpush1.msra.mxu0 0.0
    %1888 = vmatprep.subr.mxu0 0.0
    %1889 = vmatpush1.msra.mxu0 0.0
    %1890 = vmatprep.subr.mxu0 0.0
    %1891 = vmatpush1.msra.mxu0 0.0
    %1892 = vmatprep.subr.mxu0 0.0
    %1893 = vmatpush1.msra.mxu0 0.0
    %1894 = vmatprep.subr.mxu0 0.0
    %1895 = vmatpush1.msra.mxu0 0.0
    %1896 = vmatprep.subr.mxu0 0.0
    %1897 = vmatpush1.msra.mxu0 %v1108
    %1898 = vmatprep.subr.mxu0 0.0
    %1899 = vmatpush1.msra.mxu0 %v1107
    %1900 = vmatprep.subr.mxu0 0.0
    %1901 = vmatpush1.msra.mxu0 %v1106
    %1902 = vmatprep.subr.mxu0 0.0
    %1903 = vmatpush1.msra.mxu0 %v1105
    %1904 = vmatprep.subr.mxu0 0.0
    %1905 = vmatpush1.msra.mxu0 %v1104
    %1906 = vmatprep.subr.mxu0 0.0
    %1907 = vmatpush1.msra.mxu0 %v1103
    %1908 = vmatprep.subr.mxu0 0.0
    %1909 = vmatpush1.msra.mxu0 %v1102
    %1910 = vmatprep.subr.mxu0 0.0
    %1911 = vmatpush1.msra.mxu0 %v1101
    %1912 = vmatprep.subr.mxu0 0.0
    %1913 = vmatpush2.msra.mxu0 0.0
    %1914 = vmatprep.subr.mxu0 0.0
    %1915 = vmatpush2.msra.mxu0 0.0
    %1916 = vmatprep.subr.mxu0 0.0
    %1917 = vmatpush2.msra.mxu0 0.0
    %1918 = vmatprep.subr.mxu0 0.0
    %1919 = vmatpush2.msra.mxu0 0.0
    %1920 = vmatprep.subr.mxu0 0.0
    %1921 = vmatpush2.msra.mxu0 0.0
    %1922 = vmatprep.subr.mxu0 0.0
    %1923 = vmatpush2.msra.mxu0 0.0
    %1924 = vmatprep.subr.mxu0 0.0
    %1925 = vmatpush2.msra.mxu0 0.0
    %1926 = vmatprep.subr.mxu0 0.0
    %1927 = vmatpush2.msra.mxu0 0.0
    %1928 = vmatprep.subr.mxu0 0.0
    %1929 = vmatpush2.msra.mxu0 0.0
    %1930 = vmatprep.subr.mxu0 0.0
    %1931 = vmatpush2.msra.mxu0 0.0
    %1932 = vmatprep.subr.mxu0 0.0
    %1933 = vmatpush2.msra.mxu0 0.0
    %1934 = vmatprep.subr.mxu0 0.0
    %1935 = vmatpush2.msra.mxu0 0.0
    %1936 = vmatprep.subr.mxu0 0.0
    %1937 = vmatpush2.msra.mxu0 0.0
    %1938 = vmatprep.subr.mxu0 0.0
    %1939 = vmatpush2.msra.mxu0 0.0
    %1940 = vmatprep.subr.mxu0 0.0
    %1941 = vmatpush2.msra.mxu0 0.0
    %1942 = vmatprep.subr.mxu0 0.0
    %1943 = vmatpush2.msra.mxu0 0.0
    %1944 = vmatprep.mubr.f32.mxu0 0.0
    %1945 = vmatmul.mubr.f32.gmra.mxu0 %v1878
    %v1946 = vpop.f32.mrf.mxu0
    %v1947 = vadd.f32 %v1114, %v1946
    %v1948 = vpop.f32.mrf.mxu0
    %1949 = vdwg.mxu0
    %v1950 = vxor.u32 %v1947, 2147483648
    %v1951 = vmul.f32 %v1950, 1.442695
    %v1952 = vpow.pop %v1951
    %v1953 = vadd.f32 %v1952, 1.0
    %v1954 = vrcp.pop %v1953
    %v1955 = vmul.f32 1.0, %v1954
    %v1956 = vtanh.pop %v1947
    %v1957 = vmul.f32 %v1955, %v1859
    %1959 = vrot.lane.b32.xlu0 %v1956, 32
    %v1960 = vpop.permute.xlu0 %1959
    %v1962 = vmul.f32 %v1955, %v1960
    %1964 = vrot.lane.b32.xlu0 %v1962, 32
    %v1965 = vpop.permute.xlu0 %1964
    %v1967 = vadd.f32 %v1957, %v1965
    %v1968 = vtanh.pop %v1967
    %1970 = vrot.lane.b32.xlu0 %v1968, 32
    %v1971 = vpop.permute.xlu0 %1970
    %v1973 = vmul.f32 %v1955, %v1971
    %v1974 = vld [vmem:[#allocation10] sm:$0xff]
    %v1975 = vld [vmem:[#allocation10 + $0x8] sm:$0xff]
    %v1976 = vld [vmem:[#allocation10 + $0x10] sm:$0xff]
    %v1977 = vld [vmem:[#allocation10 + $0x18] sm:$0xff]
    %v1978 = vld [vmem:[%s9] sm:$0x1]
    %v1980 = vlaneseq
    %v1981 = vshrl.u32 %v1980, 7
    %v1982 = vsub.s32 0, %v1981
    %v1983 = vrot.slane %v1978, %v1982
    %1986 = vrot.lane.b32.xlu0 %v1973, 64
    %v1987 = vpop.permute.xlu0 %1986
    %v1988 = vsel %vm254, %v1987, 0
    %1990 = vmatprep.subr.mxu0 0.0
    %1991 = vmatpush1.msra.mxu0 0.0
    %1992 = vmatprep.subr.mxu0 0.0
    %1993 = vmatpush1.msra.mxu0 0.0
    %1994 = vmatprep.subr.mxu0 0.0
    %1995 = vmatpush1.msra.mxu0 0.0
    %1996 = vmatprep.subr.mxu0 0.0
    %1997 = vmatpush1.msra.mxu0 0.0
    %1998 = vmatprep.subr.mxu0 0.0
    %1999 = vmatpush1.msra.mxu0 0.0
    %2000 = vmatprep.subr.mxu0 0.0
    %2001 = vmatpush1.msra.mxu0 0.0
    %2002 = vmatprep.subr.mxu0 0.0
    %2003 = vmatpush1.msra.mxu0 0.0
    %2004 = vmatprep.subr.mxu0 0.0
    %2005 = vmatpush1.msra.mxu0 0.0
    %2006 = vmatprep.subr.mxu0 0.0
    %2007 = vmatpush1.msra.mxu0 0.0
    %2008 = vmatprep.subr.mxu0 0.0
    %2009 = vmatpush1.msra.mxu0 0.0
    %2010 = vmatprep.subr.mxu0 0.0
    %2011 = vmatpush1.msra.mxu0 0.0
    %2012 = vmatprep.subr.mxu0 0.0
    %2013 = vmatpush1.msra.mxu0 0.0
    %2014 = vmatprep.subr.mxu0 0.0
    %2015 = vmatpush1.msra.mxu0 %v1977
    %2016 = vmatprep.subr.mxu0 0.0
    %2017 = vmatpush1.msra.mxu0 %v1976
    %2018 = vmatprep.subr.mxu0 0.0
    %2019 = vmatpush1.msra.mxu0 %v1975
    %2020 = vmatprep.subr.mxu0 0.0
    %2021 = vmatpush1.msra.mxu0 %v1974
    %2022 = vmatprep.subr.mxu0 0.0
    %2023 = vmatpush2.msra.mxu0 0.0
    %2024 = vmatprep.subr.mxu0 0.0
    %2025 = vmatpush2.msra.mxu0 0.0
    %2026 = vmatprep.subr.mxu0 0.0
    %2027 = vmatpush2.msra.mxu0 0.0
    %2028 = vmatprep.subr.mxu0 0.0
    %2029 = vmatpush2.msra.mxu0 0.0
    %2030 = vmatprep.subr.mxu0 0.0
    %2031 = vmatpush2.msra.mxu0 0.0
    %2032 = vmatprep.subr.mxu0 0.0
    %2033 = vmatpush2.msra.mxu0 0.0
    %2034 = vmatprep.subr.mxu0 0.0
    %2035 = vmatpush2.msra.mxu0 0.0
    %2036 = vmatprep.subr.mxu0 0.0
    %2037 = vmatpush2.msra.mxu0 0.0
    %2038 = vmatprep.subr.mxu0 0.0
    %2039 = vmatpush2.msra.mxu0 0.0
    %2040 = vmatprep.subr.mxu0 0.0
    %2041 = vmatpush2.msra.mxu0 0.0
    %2042 = vmatprep.subr.mxu0 0.0
    %2043 = vmatpush2.msra.mxu0 0.0
    %2044 = vmatprep.subr.mxu0 0.0
    %2045 = vmatpush2.msra.mxu0 0.0
    %2046 = vmatprep.subr.mxu0 0.0
    %2047 = vmatpush2.msra.mxu0 0.0
    %2048 = vmatprep.subr.mxu0 0.0
    %2049 = vmatpush2.msra.mxu0 0.0
    %2050 = vmatprep.subr.mxu0 0.0
    %2051 = vmatpush2.msra.mxu0 0.0
    %2052 = vmatprep.subr.mxu0 0.0
    %2053 = vmatpush2.msra.mxu0 0.0
    %2054 = vmatprep.mubr.f32.mxu0 0.0
    %2055 = vmatmul.mubr.f32.gmra.mxu0 %v1988
    %v2056 = vpop.f32.mrf.mxu0
    %v2057 = vadd.f32 %v1983, %v2056
    %v2058 = vpop.f32.mrf.mxu0
    %2059 = vdwg.mxu0
    %v2060 = vld [vmem:[%s10] sm:$0xff]
    %v2061 = vld [vmem:[%s10 + $0x8] sm:$0xff]
    %v2062 = vld [vmem:[%s10 + $0x10] sm:$0xff]
    %v2063 = vld [vmem:[%s10 + $0x18] sm:$0xff]
    %v2064 = vld [vmem:[%s11] sm:$0x1]
    %v2066 = vlaneseq
    %v2067 = vshrl.u32 %v2066, 7
    %v2068 = vsub.s32 0, %v2067
    %v2069 = vrot.slane %v2064, %v2068
    %v2072 = vsel %vm254, %v2057, 0
    %2074 = vmatprep.subr.mxu0 0.0
    %2075 = vmatpush1.msra.mxu0 0.0
    %2076 = vmatprep.subr.mxu0 0.0
    %2077 = vmatpush1.msra.mxu0 0.0
    %2078 = vmatprep.subr.mxu0 0.0
    %2079 = vmatpush1.msra.mxu0 0.0
    %2080 = vmatprep.subr.mxu0 0.0
    %2081 = vmatpush1.msra.mxu0 0.0
    %2082 = vmatprep.subr.mxu0 0.0
    %2083 = vmatpush1.msra.mxu0 0.0
    %2084 = vmatprep.subr.mxu0 0.0
    %2085 = vmatpush1.msra.mxu0 0.0
    %2086 = vmatprep.subr.mxu0 0.0
    %2087 = vmatpush1.msra.mxu0 0.0
    %2088 = vmatprep.subr.mxu0 0.0
    %2089 = vmatpush1.msra.mxu0 0.0
    %2090 = vmatprep.subr.mxu0 0.0
    %2091 = vmatpush1.msra.mxu0 0.0
    %2092 = vmatprep.subr.mxu0 0.0
    %2093 = vmatpush1.msra.mxu0 0.0
    %2094 = vmatprep.subr.mxu0 0.0
    %2095 = vmatpush1.msra.mxu0 0.0
    %2096 = vmatprep.subr.mxu0 0.0
    %2097 = vmatpush1.msra.mxu0 0.0
    %2098 = vmatprep.subr.mxu0 0.0
    %2099 = vmatpush1.msra.mxu0 %v2063
    %2100 = vmatprep.subr.mxu0 0.0
    %2101 = vmatpush1.msra.mxu0 %v2062
    %2102 = vmatprep.subr.mxu0 0.0
    %2103 = vmatpush1.msra.mxu0 %v2061
    %2104 = vmatprep.subr.mxu0 0.0
    %2105 = vmatpush1.msra.mxu0 %v2060
    %2106 = vmatprep.subr.mxu0 0.0
    %2107 = vmatpush2.msra.mxu0 0.0
    %2108 = vmatprep.subr.mxu0 0.0
    %2109 = vmatpush2.msra.mxu0 0.0
    %2110 = vmatprep.subr.mxu0 0.0
    %2111 = vmatpush2.msra.mxu0 0.0
    %2112 = vmatprep.subr.mxu0 0.0
    %2113 = vmatpush2.msra.mxu0 0.0
    %2114 = vmatprep.subr.mxu0 0.0
    %2115 = vmatpush2.msra.mxu0 0.0
    %2116 = vmatprep.subr.mxu0 0.0
    %2117 = vmatpush2.msra.mxu0 0.0
    %2118 = vmatprep.subr.mxu0 0.0
    %2119 = vmatpush2.msra.mxu0 0.0
    %2120 = vmatprep.subr.mxu0 0.0
    %2121 = vmatpush2.msra.mxu0 0.0
    %2122 = vmatprep.subr.mxu0 0.0
    %2123 = vmatpush2.msra.mxu0 0.0
    %2124 = vmatprep.subr.mxu0 0.0
    %2125 = vmatpush2.msra.mxu0 0.0
    %2126 = vmatprep.subr.mxu0 0.0
    %2127 = vmatpush2.msra.mxu0 0.0
    %2128 = vmatprep.subr.mxu0 0.0
    %2129 = vmatpush2.msra.mxu0 0.0
    %2130 = vmatprep.subr.mxu0 0.0
    %2131 = vmatpush2.msra.mxu0 0.0
    %2132 = vmatprep.subr.mxu0 0.0
    %2133 = vmatpush2.msra.mxu0 0.0
    %2134 = vmatprep.subr.mxu0 0.0
    %2135 = vmatpush2.msra.mxu0 0.0
    %2136 = vmatprep.subr.mxu0 0.0
    %2137 = vmatpush2.msra.mxu0 0.0
    %2138 = vmatprep.mubr.f32.mxu0 0.0
    %2139 = vmatmul.mubr.f32.gmra.mxu0 %v2072
    %v2140 = vpop.f32.mrf.mxu0
    %v2141 = vadd.f32 %v2069, %v2140
    %v2142 = vpop.f32.mrf.mxu0
    %2143 = vdwg.mxu0
    %v2144 = vxor.u32 %v2141, 2147483648
    %v2145 = vmul.f32 %v2144, 1.442695
    %v2146 = vpow.pop %v2145
    %v2147 = vadd.f32 %v2146, 1.0
    %v2148 = vrcp.pop %v2147
    %v2149 = vmul.f32 1.0, %v2148
    %vm2150 = vcmask 25600
    %2151 = vst.msk [vmem:[#allocation11] sm:$0x3] %vm2150, %v2149
    // Predicated region
    $region70: #{tpu_custom_call.1} parent=1 // pred_check
      _
    $region71: #{tpu_custom_call.1} parent=1 // pred_check_branch
      %2153 = sbr.rel (0) target = $region73
    $region72: #{tpu_custom_call.1} parent=1 // pred_region
      %s2155 = ssub.s32 32, 32
      %2156 = vsyncadd [#allocation4], %s2155
      %s2158 = sshll.u32 [#allocation11], 4
      %s2159 = int_to_ptr.vmem [resolvable:$true] %s2158
      %2161 = dma.vmem_to_hbm [thread:$0]  %s2159, 32, %s12, [#allocation4]
    $region73: #{tpu_custom_call.1} parent=1 // pred_fallthru
      _
    // Predicated region
    $region74: #{tpu_custom_call.1} parent=1 // pred_check
      _
    $region75: #{tpu_custom_call.1} parent=1 // pred_check_branch
      %2163 = sbr.rel (0) target = $region77
    $region76: #{tpu_custom_call.1} parent=1 // pred_region
      %2164 = dma.done [#allocation4], 32
    $region77: #{tpu_custom_call.1} parent=1 // pred_fallthru
      _
    %2165 = vsyncpa [#allocation3], 1
    %2166 = vsyncpa [#allocation6], 1
    %2167 = vsyncpa [#allocation9], 1
    %2168 = vsyncpa [#allocation4], 1

</llo_original>
